<compile_context>
chip_gen: v5e
topology: v5e:2x2
jax: 0.10.0
libtpu: 0.0.40
codegen_flags: <defaults>
</compile_context>

<pallas_src>
import jax
import jax.numpy as jnp
import numpy as np
from jax.experimental import pallas as pl
from jax.experimental.pallas import tpu as pltpu


# --------------------------------------------------------------------------
# Fused kernel factory: (num_layers x LSTM) + final Linear, one invocation.
# --------------------------------------------------------------------------
def make_mauro_lstm_kernel(B, T, H, num_layers, compute_dtype):
    G = 4 * H  # fused gate width; lane-dense (==128) for H=32

    def kernel(*refs):
        # refs = [x, (wx, wh, b) * num_layers, w_fc, b_fc, out]
        x_ref = refs[0]
        layer_refs = [(refs[1 + 3 * l], refs[2 + 3 * l], refs[3 + 3 * l])
                      for l in range(num_layers)]
        wfc_ref = refs[1 + 3 * num_layers]
        bfc_ref = refs[2 + 3 * num_layers]
        out_ref = refs[3 + 3 * num_layers]

        # time-major flat input: row index = t*B + b
        seq = x_ref[...].astype(compute_dtype)          # (T*B, D_in)
        h = None
        for l, (wx_ref, wh_ref, b_ref) in enumerate(layer_refs):
            last_layer = (l == num_layers - 1)
            wx = wx_ref[...].astype(compute_dtype)      # (D_in, 4H) cols [i|f|o|g]
            wh = wh_ref[...].astype(compute_dtype)      # (H,    4H)
            b = b_ref[...]                              # (1,    4H) f32

            # Hoisted, fused input projection for ALL timesteps + single bias
            # add: one lane-dense MXU matmul per layer instead of 4*T tiny ones.
            xw = jnp.dot(seq, wx,
                         preferred_element_type=jnp.float32) + b   # (T*B, 4H) f32

            h = jnp.zeros((B, H), jnp.float32)
            c = jnp.zeros((B, H), jnp.float32)
            hs = []
            # Static (fully unrolled) time loop: recurrence stays in registers,
            # per-step critical path = one (B,H)x(H,4H) matmul + elementwise.
            for t in range(T):
                gates = xw[t * B:(t + 1) * B, :] + jnp.dot(
                    h.astype(compute_dtype), wh,
                    preferred_element_type=jnp.float32)            # (B, 4H) f32
                s = jax.nn.sigmoid(gates[:, :3 * H])   # [i | f | o] in one shot
                g = jnp.tanh(gates[:, 3 * H:])
                i_g = s[:, 0 * H:1 * H]
                f_g = s[:, 1 * H:2 * H]
                o_g = s[:, 2 * H:3 * H]
                c = f_g * c + i_g * g
                h = o_g * jnp.tanh(c)
                if not last_layer:
                    hs.append(h)
            if not last_layer:
                # next layer's time-major flat input sequence (never hits HBM)
                seq = jnp.concatenate(hs, axis=0).astype(compute_dtype)  # (T*B, H)

        # Fused final Linear on the last timestep of the last layer.
        out_ref[...] = (jnp.dot(h.astype(compute_dtype),
                                wfc_ref[...].astype(compute_dtype),
                                preferred_element_type=jnp.float32)
                        + bfc_ref[...])
    return kernel


# --------------------------------------------------------------------------
# Weight prep: fuse PyTorch [i,f,g,o] rows into lane-dense [i,f,o,g] columns.
# --------------------------------------------------------------------------
def _fuse_gate_weights(w_ih, w_hh, b_ih, b_hh, H):
    # PyTorch nn.LSTM row order is [i, f, g, o]; reorder columns to [i, f, o, g]
    # so sigmoid applies to one contiguous 3H slice and tanh to the last H.
    order = (0, 1, 3, 2)
    d_in = w_ih.shape[1]
    w4x = w_ih.reshape(4, H, d_in)
    w4h = w_hh.reshape(4, H, H)
    b4 = (b_ih + b_hh).reshape(4, H)
    wx = jnp.concatenate([w4x[k].T for k in order], axis=1)   # (d_in, 4H)
    wh = jnp.concatenate([w4h[k].T for k in order], axis=1)   # (H,    4H)
    b = jnp.concatenate([b4[k] for k in order], axis=0).reshape(1, 4 * H)
    return wx, wh, b


# --------------------------------------------------------------------------
# Forward pass == MauroLSTM.forward (zero h0/c0, fc on last timestep).
# --------------------------------------------------------------------------
def mauro_lstm_forward(x, lstm_params, fc_params, hidden_dim,
                       compute_dtype=jnp.float32):
    B, T, D = x.shape
    H = hidden_dim
    L = len(lstm_params)
    w_fc, b_fc = fc_params
    O = w_fc.shape[0]

    # Time-major flattened input (row = t*B + b). 64 elements here — negligible.
    x_tm = jnp.transpose(x.astype(jnp.float32), (1, 0, 2)).reshape(T * B, D)

    inputs = [x_tm]
    for (w_ih, w_hh, b_ih, b_hh) in lstm_params:
        wx, wh, b = _fuse_gate_weights(w_ih, w_hh, b_ih, b_hh, H)
        inputs += [wx, wh, b]
    inputs += [w_fc.T, b_fc.reshape(1, O)]          # (H, O), (1, O)

    # All inputs are 2D and each block equals the full array (TPU-tile legal).
    in_specs = [pl.BlockSpec(arr.shape, lambda i: (0, 0)) for arr in inputs]

    kernel = make_mauro_lstm_kernel(B=B, T=T, H=H, num_layers=L,
                                    compute_dtype=compute_dtype)

    # NOTE(v7x): at these shapes total VMEM use is well under 1 MiB; for large
    # H set pltpu.CompilerParams(vmem_limit_bytes=...) and single-buffer the
    # loop-invariant weights to respect the smaller 64 MiB VMEM.
    return pl.pallas_call(
        kernel,
        out_shape=jax.ShapeDtypeStruct((B, O), jnp.float32),
        grid=(1,),                                  # one invocation; time loop is in-kernel
        in_specs=in_specs,
        out_specs=pl.BlockSpec((B, O), lambda i: (0, 0)),
        compiler_params=pltpu.CompilerParams(
            dimension_semantics=("arbitrary",)),
    )(*inputs)


# --------------------------------------------------------------------------
# Parameter init (deterministic, PyTorch-style uniform(-1/sqrt(H), 1/sqrt(H)))
# --------------------------------------------------------------------------
def init_params(key, input_dim, hidden_dim, num_layers, output_dim):
    bound = 1.0 / np.sqrt(hidden_dim)
    lstm_params = []
    for layer in range(num_layers):
        d_in = input_dim if layer == 0 else hidden_dim
        key, k1, k2, k3, k4 = jax.random.split(key, 5)
        w_ih = jax.random.uniform(k1, (4 * hidden_dim, d_in), jnp.float32,
                                  -bound, bound)
        w_hh = jax.random.uniform(k2, (4 * hidden_dim, hidden_dim),
                                  jnp.float32, -bound, bound)
        b_ih = jax.random.uniform(k3, (4 * hidden_dim,), jnp.float32,
                                  -bound, bound)
        b_hh = jax.random.uniform(k4, (4 * hidden_dim,), jnp.float32,
                                  -bound, bound)
        lstm_params.append((w_ih, w_hh, b_ih, b_hh))
    key, kf1, kf2 = jax.random.split(key, 3)
    w_fc = jax.random.uniform(kf1, (output_dim, hidden_dim), jnp.float32,
                              -bound, bound)
    b_fc = jax.random.uniform(kf2, (output_dim,), jnp.float32, -bound, bound)
    return lstm_params, (w_fc, b_fc)


# --------------------------------------------------------------------------
# Pure-JAX reference (mirrors torch.nn.LSTM math), for validation only
# --------------------------------------------------------------------------
def reference_forward(x, lstm_params, fc_params, hidden_dim):
    B, T, D = x.shape
    seq = x.astype(jnp.float32)
    for (w_ih, w_hh, b_ih, b_hh) in lstm_params:
        h = jnp.zeros((B, hidden_dim), jnp.float32)
        c = jnp.zeros((B, hidden_dim), jnp.float32)
        outs = []
        for t in range(T):
            gates = seq[:, t, :] @ w_ih.T + h @ w_hh.T + b_ih + b_hh
            i, f, g, o = jnp.split(gates, 4, axis=-1)
            i, f, o = jax.nn.sigmoid(i), jax.nn.sigmoid(f), jax.nn.sigmoid(o)
            g = jnp.tanh(g)
            c = f * c + i * g
            h = o * jnp.tanh(c)
            outs.append(h)
        seq = jnp.stack(outs, axis=1)
    w_fc, b_fc = fc_params
    return seq[:, -1, :] @ w_fc.T + b_fc


# --------------------------------------------------------------------------
if __name__ == "__main__":
    # x: (batch, seq_len, input_dim) — batch_first like the PyTorch module.
    B, T = 2, 8
    input_dim, hidden_dim, num_layers, output_dim = 4, 32, 2, 3

    key = jax.random.PRNGKey(0)
    key, kx = jax.random.split(key)
    x = jax.random.normal(kx, (B, T, input_dim), jnp.float32)

    lstm_params, fc_params = init_params(key, input_dim, hidden_dim,
                                         num_layers, output_dim)

    out = mauro_lstm_forward(x, lstm_params, fc_params, hidden_dim)
    out = jax.block_until_ready(out)

    ref = reference_forward(x, lstm_params, fc_params, hidden_dim)
    np.testing.assert_allclose(np.asarray(out), np.asarray(ref),
                               rtol=5e-3, atol=5e-3)

    print("KERNEL_OK")
</pallas_src>

<mosaic_0001>
module attributes {stable_mosaic.version = 11 : i64} {
  func.func @kernel(%arg0: i32, %arg1: memref<16x4xf32, #tpu.memory_space<vmem>>, %arg2: memref<4x128xf32, #tpu.memory_space<vmem>>, %arg3: memref<32x128xf32, #tpu.memory_space<vmem>>, %arg4: memref<1x128xf32, #tpu.memory_space<vmem>>, %arg5: memref<32x128xf32, #tpu.memory_space<vmem>>, %arg6: memref<32x128xf32, #tpu.memory_space<vmem>>, %arg7: memref<1x128xf32, #tpu.memory_space<vmem>>, %arg8: memref<32x3xf32, #tpu.memory_space<vmem>>, %arg9: memref<1x3xf32, #tpu.memory_space<vmem>>, %arg10: memref<2x3xf32, #tpu.memory_space<vmem>>) attributes {dimension_semantics = [#tpu.dimension_semantics<arbitrary>], iteration_bounds = array<i64: 1>, scalar_prefetch = 0 : i64, scratch_operands = 0 : i64, tpu.core_type = #tpu.core_type<tc>, window_params = [{pipeline_mode = #tpu.pipeline_mode<synchronous>, transform_indices = @transform_0, window_bounds = array<i64: 16, 4>}, {pipeline_mode = #tpu.pipeline_mode<synchronous>, transform_indices = @transform_1, window_bounds = array<i64: 4, 128>}, {pipeline_mode = #tpu.pipeline_mode<synchronous>, transform_indices = @transform_2, window_bounds = array<i64: 32, 128>}, {pipeline_mode = #tpu.pipeline_mode<synchronous>, transform_indices = @transform_3, window_bounds = array<i64: 1, 128>}, {pipeline_mode = #tpu.pipeline_mode<synchronous>, transform_indices = @transform_4, window_bounds = array<i64: 32, 128>}, {pipeline_mode = #tpu.pipeline_mode<synchronous>, transform_indices = @transform_5, window_bounds = array<i64: 32, 128>}, {pipeline_mode = #tpu.pipeline_mode<synchronous>, transform_indices = @transform_6, window_bounds = array<i64: 1, 128>}, {pipeline_mode = #tpu.pipeline_mode<synchronous>, transform_indices = @transform_7, window_bounds = array<i64: 32, 3>}, {pipeline_mode = #tpu.pipeline_mode<synchronous>, transform_indices = @transform_8, window_bounds = array<i64: 1, 3>}, {pipeline_mode = #tpu.pipeline_mode<synchronous>, transform_indices = @transform_9, window_bounds = array<i64: 2, 3>}]} {
    %c0 = arith.constant 0 : index
    %c0_0 = arith.constant 0 : index
    %0 = vector.load %arg1[%c0, %c0_0] : memref<16x4xf32, #tpu.memory_space<vmem>>, vector<16x4xf32>
    %c0_1 = arith.constant 0 : index
    %c0_2 = arith.constant 0 : index
    %1 = vector.load %arg2[%c0_1, %c0_2] : memref<4x128xf32, #tpu.memory_space<vmem>>, vector<4x128xf32>
    %c0_3 = arith.constant 0 : index
    %c0_4 = arith.constant 0 : index
    %2 = vector.load %arg3[%c0_3, %c0_4] : memref<32x128xf32, #tpu.memory_space<vmem>>, vector<32x128xf32>
    %c0_5 = arith.constant 0 : index
    %c0_6 = arith.constant 0 : index
    %3 = vector.load %arg4[%c0_5, %c0_6] : memref<1x128xf32, #tpu.memory_space<vmem>>, vector<1x128xf32>
    %cst = arith.constant dense<0.000000e+00> : vector<16x128xf32>
    %4 = tpu.matmul %0, %1, %cst {dimension_numbers = #tpu.dot_dimension_numbers<[1], [0], [0], [1], [0, 0, 1, 1], [], []>} : vector<16x4xf32>, vector<4x128xf32>, vector<16x128xf32> -> vector<16x128xf32>
    %5 = vector.broadcast %3 : vector<1x128xf32> to vector<16x128xf32>
    %6 = arith.addf %4, %5 : vector<16x128xf32>
    %cst_7 = arith.constant 0.000000e+00 : f32
    %7 = vector.broadcast %cst_7 : f32 to vector<2x32xf32>
    %cst_8 = arith.constant 0.000000e+00 : f32
    %8 = vector.broadcast %cst_8 : f32 to vector<2x32xf32>
    %9 = vector.extract_strided_slice %6 {offsets = [0, 0], sizes = [2, 128], strides = [1, 1]} : vector<16x128xf32> to vector<2x128xf32>
    %cst_9 = arith.constant dense<0.000000e+00> : vector<2x128xf32>
    %10 = tpu.matmul %7, %2, %cst_9 {dimension_numbers = #tpu.dot_dimension_numbers<[1], [0], [0], [1], [0, 0, 1, 1], [], []>} : vector<2x32xf32>, vector<32x128xf32>, vector<2x128xf32> -> vector<2x128xf32>
    %11 = arith.addf %9, %10 : vector<2x128xf32>
    %12 = vector.extract_strided_slice %11 {offsets = [0, 0], sizes = [2, 96], strides = [1, 1]} : vector<2x128xf32> to vector<2x96xf32>
    %13 = arith.negf %12 : vector<2x96xf32>
    %14 = math.exp %13 : vector<2x96xf32>
    %cst_10 = arith.constant 1.000000e+00 : f32
    %15 = vector.broadcast %cst_10 : f32 to vector<2x96xf32>
    %16 = arith.addf %15, %14 : vector<2x96xf32>
    %17 = arith.divf %15, %16 : vector<2x96xf32>
    %18 = vector.extract_strided_slice %11 {offsets = [0, 96], sizes = [2, 32], strides = [1, 1]} : vector<2x128xf32> to vector<2x32xf32>
    %19 = math.tanh %18 : vector<2x32xf32>
    %20 = vector.extract_strided_slice %17 {offsets = [0, 0], sizes = [2, 32], strides = [1, 1]} : vector<2x96xf32> to vector<2x32xf32>
    %21 = vector.extract_strided_slice %17 {offsets = [0, 32], sizes = [2, 32], strides = [1, 1]} : vector<2x96xf32> to vector<2x32xf32>
    %22 = vector.extract_strided_slice %17 {offsets = [0, 64], sizes = [2, 32], strides = [1, 1]} : vector<2x96xf32> to vector<2x32xf32>
    %23 = arith.mulf %21, %8 : vector<2x32xf32>
    %24 = arith.mulf %20, %19 : vector<2x32xf32>
    %25 = arith.addf %23, %24 : vector<2x32xf32>
    %26 = math.tanh %25 : vector<2x32xf32>
    %27 = arith.mulf %22, %26 : vector<2x32xf32>
    %28 = vector.extract_strided_slice %6 {offsets = [2, 0], sizes = [2, 128], strides = [1, 1]} : vector<16x128xf32> to vector<2x128xf32>
    %cst_11 = arith.constant dense<0.000000e+00> : vector<2x128xf32>
    %29 = tpu.matmul %27, %2, %cst_11 {dimension_numbers = #tpu.dot_dimension_numbers<[1], [0], [0], [1], [0, 0, 1, 1], [], []>} : vector<2x32xf32>, vector<32x128xf32>, vector<2x128xf32> -> vector<2x128xf32>
    %30 = arith.addf %28, %29 : vector<2x128xf32>
    %31 = vector.extract_strided_slice %30 {offsets = [0, 0], sizes = [2, 96], strides = [1, 1]} : vector<2x128xf32> to vector<2x96xf32>
    %32 = arith.negf %31 : vector<2x96xf32>
    %33 = math.exp %32 : vector<2x96xf32>
    %cst_12 = arith.constant 1.000000e+00 : f32
    %34 = vector.broadcast %cst_12 : f32 to vector<2x96xf32>
    %35 = arith.addf %34, %33 : vector<2x96xf32>
    %36 = arith.divf %34, %35 : vector<2x96xf32>
    %37 = vector.extract_strided_slice %30 {offsets = [0, 96], sizes = [2, 32], strides = [1, 1]} : vector<2x128xf32> to vector<2x32xf32>
    %38 = math.tanh %37 : vector<2x32xf32>
    %39 = vector.extract_strided_slice %36 {offsets = [0, 0], sizes = [2, 32], strides = [1, 1]} : vector<2x96xf32> to vector<2x32xf32>
    %40 = vector.extract_strided_slice %36 {offsets = [0, 32], sizes = [2, 32], strides = [1, 1]} : vector<2x96xf32> to vector<2x32xf32>
    %41 = vector.extract_strided_slice %36 {offsets = [0, 64], sizes = [2, 32], strides = [1, 1]} : vector<2x96xf32> to vector<2x32xf32>
    %42 = arith.mulf %40, %25 : vector<2x32xf32>
    %43 = arith.mulf %39, %38 : vector<2x32xf32>
    %44 = arith.addf %42, %43 : vector<2x32xf32>
    %45 = math.tanh %44 : vector<2x32xf32>
    %46 = arith.mulf %41, %45 : vector<2x32xf32>
    %47 = vector.extract_strided_slice %6 {offsets = [4, 0], sizes = [2, 128], strides = [1, 1]} : vector<16x128xf32> to vector<2x128xf32>
    %cst_13 = arith.constant dense<0.000000e+00> : vector<2x128xf32>
    %48 = tpu.matmul %46, %2, %cst_13 {dimension_numbers = #tpu.dot_dimension_numbers<[1], [0], [0], [1], [0, 0, 1, 1], [], []>} : vector<2x32xf32>, vector<32x128xf32>, vector<2x128xf32> -> vector<2x128xf32>
    %49 = arith.addf %47, %48 : vector<2x128xf32>
    %50 = vector.extract_strided_slice %49 {offsets = [0, 0], sizes = [2, 96], strides = [1, 1]} : vector<2x128xf32> to vector<2x96xf32>
    %51 = arith.negf %50 : vector<2x96xf32>
    %52 = math.exp %51 : vector<2x96xf32>
    %cst_14 = arith.constant 1.000000e+00 : f32
    %53 = vector.broadcast %cst_14 : f32 to vector<2x96xf32>
    %54 = arith.addf %53, %52 : vector<2x96xf32>
    %55 = arith.divf %53, %54 : vector<2x96xf32>
    %56 = vector.extract_strided_slice %49 {offsets = [0, 96], sizes = [2, 32], strides = [1, 1]} : vector<2x128xf32> to vector<2x32xf32>
    %57 = math.tanh %56 : vector<2x32xf32>
    %58 = vector.extract_strided_slice %55 {offsets = [0, 0], sizes = [2, 32], strides = [1, 1]} : vector<2x96xf32> to vector<2x32xf32>
    %59 = vector.extract_strided_slice %55 {offsets = [0, 32], sizes = [2, 32], strides = [1, 1]} : vector<2x96xf32> to vector<2x32xf32>
    %60 = vector.extract_strided_slice %55 {offsets = [0, 64], sizes = [2, 32], strides = [1, 1]} : vector<2x96xf32> to vector<2x32xf32>
    %61 = arith.mulf %59, %44 : vector<2x32xf32>
    %62 = arith.mulf %58, %57 : vector<2x32xf32>
    %63 = arith.addf %61, %62 : vector<2x32xf32>
    %64 = math.tanh %63 : vector<2x32xf32>
    %65 = arith.mulf %60, %64 : vector<2x32xf32>
    %66 = vector.extract_strided_slice %6 {offsets = [6, 0], sizes = [2, 128], strides = [1, 1]} : vector<16x128xf32> to vector<2x128xf32>
    %cst_15 = arith.constant dense<0.000000e+00> : vector<2x128xf32>
    %67 = tpu.matmul %65, %2, %cst_15 {dimension_numbers = #tpu.dot_dimension_numbers<[1], [0], [0], [1], [0, 0, 1, 1], [], []>} : vector<2x32xf32>, vector<32x128xf32>, vector<2x128xf32> -> vector<2x128xf32>
    %68 = arith.addf %66, %67 : vector<2x128xf32>
    %69 = vector.extract_strided_slice %68 {offsets = [0, 0], sizes = [2, 96], strides = [1, 1]} : vector<2x128xf32> to vector<2x96xf32>
    %70 = arith.negf %69 : vector<2x96xf32>
    %71 = math.exp %70 : vector<2x96xf32>
    %cst_16 = arith.constant 1.000000e+00 : f32
    %72 = vector.broadcast %cst_16 : f32 to vector<2x96xf32>
    %73 = arith.addf %72, %71 : vector<2x96xf32>
    %74 = arith.divf %72, %73 : vector<2x96xf32>
    %75 = vector.extract_strided_slice %68 {offsets = [0, 96], sizes = [2, 32], strides = [1, 1]} : vector<2x128xf32> to vector<2x32xf32>
    %76 = math.tanh %75 : vector<2x32xf32>
    %77 = vector.extract_strided_slice %74 {offsets = [0, 0], sizes = [2, 32], strides = [1, 1]} : vector<2x96xf32> to vector<2x32xf32>
    %78 = vector.extract_strided_slice %74 {offsets = [0, 32], sizes = [2, 32], strides = [1, 1]} : vector<2x96xf32> to vector<2x32xf32>
    %79 = vector.extract_strided_slice %74 {offsets = [0, 64], sizes = [2, 32], strides = [1, 1]} : vector<2x96xf32> to vector<2x32xf32>
    %80 = arith.mulf %78, %63 : vector<2x32xf32>
    %81 = arith.mulf %77, %76 : vector<2x32xf32>
    %82 = arith.addf %80, %81 : vector<2x32xf32>
    %83 = math.tanh %82 : vector<2x32xf32>
    %84 = arith.mulf %79, %83 : vector<2x32xf32>
    %85 = vector.extract_strided_slice %6 {offsets = [8, 0], sizes = [2, 128], strides = [1, 1]} : vector<16x128xf32> to vector<2x128xf32>
    %cst_17 = arith.constant dense<0.000000e+00> : vector<2x128xf32>
    %86 = tpu.matmul %84, %2, %cst_17 {dimension_numbers = #tpu.dot_dimension_numbers<[1], [0], [0], [1], [0, 0, 1, 1], [], []>} : vector<2x32xf32>, vector<32x128xf32>, vector<2x128xf32> -> vector<2x128xf32>
    %87 = arith.addf %85, %86 : vector<2x128xf32>
    %88 = vector.extract_strided_slice %87 {offsets = [0, 0], sizes = [2, 96], strides = [1, 1]} : vector<2x128xf32> to vector<2x96xf32>
    %89 = arith.negf %88 : vector<2x96xf32>
    %90 = math.exp %89 : vector<2x96xf32>
    %cst_18 = arith.constant 1.000000e+00 : f32
    %91 = vector.broadcast %cst_18 : f32 to vector<2x96xf32>
    %92 = arith.addf %91, %90 : vector<2x96xf32>
    %93 = arith.divf %91, %92 : vector<2x96xf32>
    %94 = vector.extract_strided_slice %87 {offsets = [0, 96], sizes = [2, 32], strides = [1, 1]} : vector<2x128xf32> to vector<2x32xf32>
    %95 = math.tanh %94 : vector<2x32xf32>
    %96 = vector.extract_strided_slice %93 {offsets = [0, 0], sizes = [2, 32], strides = [1, 1]} : vector<2x96xf32> to vector<2x32xf32>
    %97 = vector.extract_strided_slice %93 {offsets = [0, 32], sizes = [2, 32], strides = [1, 1]} : vector<2x96xf32> to vector<2x32xf32>
    %98 = vector.extract_strided_slice %93 {offsets = [0, 64], sizes = [2, 32], strides = [1, 1]} : vector<2x96xf32> to vector<2x32xf32>
    %99 = arith.mulf %97, %82 : vector<2x32xf32>
    %100 = arith.mulf %96, %95 : vector<2x32xf32>
    %101 = arith.addf %99, %100 : vector<2x32xf32>
    %102 = math.tanh %101 : vector<2x32xf32>
    %103 = arith.mulf %98, %102 : vector<2x32xf32>
    %104 = vector.extract_strided_slice %6 {offsets = [10, 0], sizes = [2, 128], strides = [1, 1]} : vector<16x128xf32> to vector<2x128xf32>
    %cst_19 = arith.constant dense<0.000000e+00> : vector<2x128xf32>
    %105 = tpu.matmul %103, %2, %cst_19 {dimension_numbers = #tpu.dot_dimension_numbers<[1], [0], [0], [1], [0, 0, 1, 1], [], []>} : vector<2x32xf32>, vector<32x128xf32>, vector<2x128xf32> -> vector<2x128xf32>
    %106 = arith.addf %104, %105 : vector<2x128xf32>
    %107 = vector.extract_strided_slice %106 {offsets = [0, 0], sizes = [2, 96], strides = [1, 1]} : vector<2x128xf32> to vector<2x96xf32>
    %108 = arith.negf %107 : vector<2x96xf32>
    %109 = math.exp %108 : vector<2x96xf32>
    %cst_20 = arith.constant 1.000000e+00 : f32
    %110 = vector.broadcast %cst_20 : f32 to vector<2x96xf32>
    %111 = arith.addf %110, %109 : vector<2x96xf32>
    %112 = arith.divf %110, %111 : vector<2x96xf32>
    %113 = vector.extract_strided_slice %106 {offsets = [0, 96], sizes = [2, 32], strides = [1, 1]} : vector<2x128xf32> to vector<2x32xf32>
    %114 = math.tanh %113 : vector<2x32xf32>
    %115 = vector.extract_strided_slice %112 {offsets = [0, 0], sizes = [2, 32], strides = [1, 1]} : vector<2x96xf32> to vector<2x32xf32>
    %116 = vector.extract_strided_slice %112 {offsets = [0, 32], sizes = [2, 32], strides = [1, 1]} : vector<2x96xf32> to vector<2x32xf32>
    %117 = vector.extract_strided_slice %112 {offsets = [0, 64], sizes = [2, 32], strides = [1, 1]} : vector<2x96xf32> to vector<2x32xf32>
    %118 = arith.mulf %116, %101 : vector<2x32xf32>
    %119 = arith.mulf %115, %114 : vector<2x32xf32>
    %120 = arith.addf %118, %119 : vector<2x32xf32>
    %121 = math.tanh %120 : vector<2x32xf32>
    %122 = arith.mulf %117, %121 : vector<2x32xf32>
    %123 = vector.extract_strided_slice %6 {offsets = [12, 0], sizes = [2, 128], strides = [1, 1]} : vector<16x128xf32> to vector<2x128xf32>
    %cst_21 = arith.constant dense<0.000000e+00> : vector<2x128xf32>
    %124 = tpu.matmul %122, %2, %cst_21 {dimension_numbers = #tpu.dot_dimension_numbers<[1], [0], [0], [1], [0, 0, 1, 1], [], []>} : vector<2x32xf32>, vector<32x128xf32>, vector<2x128xf32> -> vector<2x128xf32>
    %125 = arith.addf %123, %124 : vector<2x128xf32>
    %126 = vector.extract_strided_slice %125 {offsets = [0, 0], sizes = [2, 96], strides = [1, 1]} : vector<2x128xf32> to vector<2x96xf32>
    %127 = arith.negf %126 : vector<2x96xf32>
    %128 = math.exp %127 : vector<2x96xf32>
    %cst_22 = arith.constant 1.000000e+00 : f32
    %129 = vector.broadcast %cst_22 : f32 to vector<2x96xf32>
    %130 = arith.addf %129, %128 : vector<2x96xf32>
    %131 = arith.divf %129, %130 : vector<2x96xf32>
    %132 = vector.extract_strided_slice %125 {offsets = [0, 96], sizes = [2, 32], strides = [1, 1]} : vector<2x128xf32> to vector<2x32xf32>
    %133 = math.tanh %132 : vector<2x32xf32>
    %134 = vector.extract_strided_slice %131 {offsets = [0, 0], sizes = [2, 32], strides = [1, 1]} : vector<2x96xf32> to vector<2x32xf32>
    %135 = vector.extract_strided_slice %131 {offsets = [0, 32], sizes = [2, 32], strides = [1, 1]} : vector<2x96xf32> to vector<2x32xf32>
    %136 = vector.extract_strided_slice %131 {offsets = [0, 64], sizes = [2, 32], strides = [1, 1]} : vector<2x96xf32> to vector<2x32xf32>
    %137 = arith.mulf %135, %120 : vector<2x32xf32>
    %138 = arith.mulf %134, %133 : vector<2x32xf32>
    %139 = arith.addf %137, %138 : vector<2x32xf32>
    %140 = math.tanh %139 : vector<2x32xf32>
    %141 = arith.mulf %136, %140 : vector<2x32xf32>
    %142 = vector.extract_strided_slice %6 {offsets = [14, 0], sizes = [2, 128], strides = [1, 1]} : vector<16x128xf32> to vector<2x128xf32>
    %cst_23 = arith.constant dense<0.000000e+00> : vector<2x128xf32>
    %143 = tpu.matmul %141, %2, %cst_23 {dimension_numbers = #tpu.dot_dimension_numbers<[1], [0], [0], [1], [0, 0, 1, 1], [], []>} : vector<2x32xf32>, vector<32x128xf32>, vector<2x128xf32> -> vector<2x128xf32>
    %144 = arith.addf %142, %143 : vector<2x128xf32>
    %145 = vector.extract_strided_slice %144 {offsets = [0, 0], sizes = [2, 96], strides = [1, 1]} : vector<2x128xf32> to vector<2x96xf32>
    %146 = arith.negf %145 : vector<2x96xf32>
    %147 = math.exp %146 : vector<2x96xf32>
    %cst_24 = arith.constant 1.000000e+00 : f32
    %148 = vector.broadcast %cst_24 : f32 to vector<2x96xf32>
    %149 = arith.addf %148, %147 : vector<2x96xf32>
    %150 = arith.divf %148, %149 : vector<2x96xf32>
    %151 = vector.extract_strided_slice %144 {offsets = [0, 96], sizes = [2, 32], strides = [1, 1]} : vector<2x128xf32> to vector<2x32xf32>
    %152 = math.tanh %151 : vector<2x32xf32>
    %153 = vector.extract_strided_slice %150 {offsets = [0, 0], sizes = [2, 32], strides = [1, 1]} : vector<2x96xf32> to vector<2x32xf32>
    %154 = vector.extract_strided_slice %150 {offsets = [0, 32], sizes = [2, 32], strides = [1, 1]} : vector<2x96xf32> to vector<2x32xf32>
    %155 = vector.extract_strided_slice %150 {offsets = [0, 64], sizes = [2, 32], strides = [1, 1]} : vector<2x96xf32> to vector<2x32xf32>
    %156 = arith.mulf %154, %139 : vector<2x32xf32>
    %157 = arith.mulf %153, %152 : vector<2x32xf32>
    %158 = arith.addf %156, %157 : vector<2x32xf32>
    %159 = math.tanh %158 : vector<2x32xf32>
    %160 = arith.mulf %155, %159 : vector<2x32xf32>
    %161 = tpu.concatenate %27, %46, %65, %84, %103, %122, %141, %160 in 0 : vector<2x32xf32>, vector<2x32xf32>, vector<2x32xf32>, vector<2x32xf32>, vector<2x32xf32>, vector<2x32xf32>, vector<2x32xf32>, vector<2x32xf32> -> vector<16x32xf32>
    %c0_25 = arith.constant 0 : index
    %c0_26 = arith.constant 0 : index
    %162 = vector.load %arg5[%c0_25, %c0_26] : memref<32x128xf32, #tpu.memory_space<vmem>>, vector<32x128xf32>
    %c0_27 = arith.constant 0 : index
    %c0_28 = arith.constant 0 : index
    %163 = vector.load %arg6[%c0_27, %c0_28] : memref<32x128xf32, #tpu.memory_space<vmem>>, vector<32x128xf32>
    %c0_29 = arith.constant 0 : index
    %c0_30 = arith.constant 0 : index
    %164 = vector.load %arg7[%c0_29, %c0_30] : memref<1x128xf32, #tpu.memory_space<vmem>>, vector<1x128xf32>
    %cst_31 = arith.constant dense<0.000000e+00> : vector<16x128xf32>
    %165 = tpu.matmul %161, %162, %cst_31 {dimension_numbers = #tpu.dot_dimension_numbers<[1], [0], [0], [1], [0, 0, 1, 1], [], []>} : vector<16x32xf32>, vector<32x128xf32>, vector<16x128xf32> -> vector<16x128xf32>
    %166 = vector.broadcast %164 : vector<1x128xf32> to vector<16x128xf32>
    %167 = arith.addf %165, %166 : vector<16x128xf32>
    %cst_32 = arith.constant 0.000000e+00 : f32
    %168 = vector.broadcast %cst_32 : f32 to vector<2x32xf32>
    %cst_33 = arith.constant 0.000000e+00 : f32
    %169 = vector.broadcast %cst_33 : f32 to vector<2x32xf32>
    %170 = vector.extract_strided_slice %167 {offsets = [0, 0], sizes = [2, 128], strides = [1, 1]} : vector<16x128xf32> to vector<2x128xf32>
    %cst_34 = arith.constant dense<0.000000e+00> : vector<2x128xf32>
    %171 = tpu.matmul %168, %163, %cst_34 {dimension_numbers = #tpu.dot_dimension_numbers<[1], [0], [0], [1], [0, 0, 1, 1], [], []>} : vector<2x32xf32>, vector<32x128xf32>, vector<2x128xf32> -> vector<2x128xf32>
    %172 = arith.addf %170, %171 : vector<2x128xf32>
    %173 = vector.extract_strided_slice %172 {offsets = [0, 0], sizes = [2, 96], strides = [1, 1]} : vector<2x128xf32> to vector<2x96xf32>
    %174 = arith.negf %173 : vector<2x96xf32>
    %175 = math.exp %174 : vector<2x96xf32>
    %cst_35 = arith.constant 1.000000e+00 : f32
    %176 = vector.broadcast %cst_35 : f32 to vector<2x96xf32>
    %177 = arith.addf %176, %175 : vector<2x96xf32>
    %178 = arith.divf %176, %177 : vector<2x96xf32>
    %179 = vector.extract_strided_slice %172 {offsets = [0, 96], sizes = [2, 32], strides = [1, 1]} : vector<2x128xf32> to vector<2x32xf32>
    %180 = math.tanh %179 : vector<2x32xf32>
    %181 = vector.extract_strided_slice %178 {offsets = [0, 0], sizes = [2, 32], strides = [1, 1]} : vector<2x96xf32> to vector<2x32xf32>
    %182 = vector.extract_strided_slice %178 {offsets = [0, 32], sizes = [2, 32], strides = [1, 1]} : vector<2x96xf32> to vector<2x32xf32>
    %183 = vector.extract_strided_slice %178 {offsets = [0, 64], sizes = [2, 32], strides = [1, 1]} : vector<2x96xf32> to vector<2x32xf32>
    %184 = arith.mulf %182, %169 : vector<2x32xf32>
    %185 = arith.mulf %181, %180 : vector<2x32xf32>
    %186 = arith.addf %184, %185 : vector<2x32xf32>
    %187 = math.tanh %186 : vector<2x32xf32>
    %188 = arith.mulf %183, %187 : vector<2x32xf32>
    %189 = vector.extract_strided_slice %167 {offsets = [2, 0], sizes = [2, 128], strides = [1, 1]} : vector<16x128xf32> to vector<2x128xf32>
    %cst_36 = arith.constant dense<0.000000e+00> : vector<2x128xf32>
    %190 = tpu.matmul %188, %163, %cst_36 {dimension_numbers = #tpu.dot_dimension_numbers<[1], [0], [0], [1], [0, 0, 1, 1], [], []>} : vector<2x32xf32>, vector<32x128xf32>, vector<2x128xf32> -> vector<2x128xf32>
    %191 = arith.addf %189, %190 : vector<2x128xf32>
    %192 = vector.extract_strided_slice %191 {offsets = [0, 0], sizes = [2, 96], strides = [1, 1]} : vector<2x128xf32> to vector<2x96xf32>
    %193 = arith.negf %192 : vector<2x96xf32>
    %194 = math.exp %193 : vector<2x96xf32>
    %cst_37 = arith.constant 1.000000e+00 : f32
    %195 = vector.broadcast %cst_37 : f32 to vector<2x96xf32>
    %196 = arith.addf %195, %194 : vector<2x96xf32>
    %197 = arith.divf %195, %196 : vector<2x96xf32>
    %198 = vector.extract_strided_slice %191 {offsets = [0, 96], sizes = [2, 32], strides = [1, 1]} : vector<2x128xf32> to vector<2x32xf32>
    %199 = math.tanh %198 : vector<2x32xf32>
    %200 = vector.extract_strided_slice %197 {offsets = [0, 0], sizes = [2, 32], strides = [1, 1]} : vector<2x96xf32> to vector<2x32xf32>
    %201 = vector.extract_strided_slice %197 {offsets = [0, 32], sizes = [2, 32], strides = [1, 1]} : vector<2x96xf32> to vector<2x32xf32>
    %202 = vector.extract_strided_slice %197 {offsets = [0, 64], sizes = [2, 32], strides = [1, 1]} : vector<2x96xf32> to vector<2x32xf32>
    %203 = arith.mulf %201, %186 : vector<2x32xf32>
    %204 = arith.mulf %200, %199 : vector<2x32xf32>
    %205 = arith.addf %203, %204 : vector<2x32xf32>
    %206 = math.tanh %205 : vector<2x32xf32>
    %207 = arith.mulf %202, %206 : vector<2x32xf32>
    %208 = vector.extract_strided_slice %167 {offsets = [4, 0], sizes = [2, 128], strides = [1, 1]} : vector<16x128xf32> to vector<2x128xf32>
    %cst_38 = arith.constant dense<0.000000e+00> : vector<2x128xf32>
    %209 = tpu.matmul %207, %163, %cst_38 {dimension_numbers = #tpu.dot_dimension_numbers<[1], [0], [0], [1], [0, 0, 1, 1], [], []>} : vector<2x32xf32>, vector<32x128xf32>, vector<2x128xf32> -> vector<2x128xf32>
    %210 = arith.addf %208, %209 : vector<2x128xf32>
    %211 = vector.extract_strided_slice %210 {offsets = [0, 0], sizes = [2, 96], strides = [1, 1]} : vector<2x128xf32> to vector<2x96xf32>
    %212 = arith.negf %211 : vector<2x96xf32>
    %213 = math.exp %212 : vector<2x96xf32>
    %cst_39 = arith.constant 1.000000e+00 : f32
    %214 = vector.broadcast %cst_39 : f32 to vector<2x96xf32>
    %215 = arith.addf %214, %213 : vector<2x96xf32>
    %216 = arith.divf %214, %215 : vector<2x96xf32>
    %217 = vector.extract_strided_slice %210 {offsets = [0, 96], sizes = [2, 32], strides = [1, 1]} : vector<2x128xf32> to vector<2x32xf32>
    %218 = math.tanh %217 : vector<2x32xf32>
    %219 = vector.extract_strided_slice %216 {offsets = [0, 0], sizes = [2, 32], strides = [1, 1]} : vector<2x96xf32> to vector<2x32xf32>
    %220 = vector.extract_strided_slice %216 {offsets = [0, 32], sizes = [2, 32], strides = [1, 1]} : vector<2x96xf32> to vector<2x32xf32>
    %221 = vector.extract_strided_slice %216 {offsets = [0, 64], sizes = [2, 32], strides = [1, 1]} : vector<2x96xf32> to vector<2x32xf32>
    %222 = arith.mulf %220, %205 : vector<2x32xf32>
    %223 = arith.mulf %219, %218 : vector<2x32xf32>
    %224 = arith.addf %222, %223 : vector<2x32xf32>
    %225 = math.tanh %224 : vector<2x32xf32>
    %226 = arith.mulf %221, %225 : vector<2x32xf32>
    %227 = vector.extract_strided_slice %167 {offsets = [6, 0], sizes = [2, 128], strides = [1, 1]} : vector<16x128xf32> to vector<2x128xf32>
    %cst_40 = arith.constant dense<0.000000e+00> : vector<2x128xf32>
    %228 = tpu.matmul %226, %163, %cst_40 {dimension_numbers = #tpu.dot_dimension_numbers<[1], [0], [0], [1], [0, 0, 1, 1], [], []>} : vector<2x32xf32>, vector<32x128xf32>, vector<2x128xf32> -> vector<2x128xf32>
    %229 = arith.addf %227, %228 : vector<2x128xf32>
    %230 = vector.extract_strided_slice %229 {offsets = [0, 0], sizes = [2, 96], strides = [1, 1]} : vector<2x128xf32> to vector<2x96xf32>
    %231 = arith.negf %230 : vector<2x96xf32>
    %232 = math.exp %231 : vector<2x96xf32>
    %cst_41 = arith.constant 1.000000e+00 : f32
    %233 = vector.broadcast %cst_41 : f32 to vector<2x96xf32>
    %234 = arith.addf %233, %232 : vector<2x96xf32>
    %235 = arith.divf %233, %234 : vector<2x96xf32>
    %236 = vector.extract_strided_slice %229 {offsets = [0, 96], sizes = [2, 32], strides = [1, 1]} : vector<2x128xf32> to vector<2x32xf32>
    %237 = math.tanh %236 : vector<2x32xf32>
    %238 = vector.extract_strided_slice %235 {offsets = [0, 0], sizes = [2, 32], strides = [1, 1]} : vector<2x96xf32> to vector<2x32xf32>
    %239 = vector.extract_strided_slice %235 {offsets = [0, 32], sizes = [2, 32], strides = [1, 1]} : vector<2x96xf32> to vector<2x32xf32>
    %240 = vector.extract_strided_slice %235 {offsets = [0, 64], sizes = [2, 32], strides = [1, 1]} : vector<2x96xf32> to vector<2x32xf32>
    %241 = arith.mulf %239, %224 : vector<2x32xf32>
    %242 = arith.mulf %238, %237 : vector<2x32xf32>
    %243 = arith.addf %241, %242 : vector<2x32xf32>
    %244 = math.tanh %243 : vector<2x32xf32>
    %245 = arith.mulf %240, %244 : vector<2x32xf32>
    %246 = vector.extract_strided_slice %167 {offsets = [8, 0], sizes = [2, 128], strides = [1, 1]} : vector<16x128xf32> to vector<2x128xf32>
    %cst_42 = arith.constant dense<0.000000e+00> : vector<2x128xf32>
    %247 = tpu.matmul %245, %163, %cst_42 {dimension_numbers = #tpu.dot_dimension_numbers<[1], [0], [0], [1], [0, 0, 1, 1], [], []>} : vector<2x32xf32>, vector<32x128xf32>, vector<2x128xf32> -> vector<2x128xf32>
    %248 = arith.addf %246, %247 : vector<2x128xf32>
    %249 = vector.extract_strided_slice %248 {offsets = [0, 0], sizes = [2, 96], strides = [1, 1]} : vector<2x128xf32> to vector<2x96xf32>
    %250 = arith.negf %249 : vector<2x96xf32>
    %251 = math.exp %250 : vector<2x96xf32>
    %cst_43 = arith.constant 1.000000e+00 : f32
    %252 = vector.broadcast %cst_43 : f32 to vector<2x96xf32>
    %253 = arith.addf %252, %251 : vector<2x96xf32>
    %254 = arith.divf %252, %253 : vector<2x96xf32>
    %255 = vector.extract_strided_slice %248 {offsets = [0, 96], sizes = [2, 32], strides = [1, 1]} : vector<2x128xf32> to vector<2x32xf32>
    %256 = math.tanh %255 : vector<2x32xf32>
    %257 = vector.extract_strided_slice %254 {offsets = [0, 0], sizes = [2, 32], strides = [1, 1]} : vector<2x96xf32> to vector<2x32xf32>
    %258 = vector.extract_strided_slice %254 {offsets = [0, 32], sizes = [2, 32], strides = [1, 1]} : vector<2x96xf32> to vector<2x32xf32>
    %259 = vector.extract_strided_slice %254 {offsets = [0, 64], sizes = [2, 32], strides = [1, 1]} : vector<2x96xf32> to vector<2x32xf32>
    %260 = arith.mulf %258, %243 : vector<2x32xf32>
    %261 = arith.mulf %257, %256 : vector<2x32xf32>
    %262 = arith.addf %260, %261 : vector<2x32xf32>
    %263 = math.tanh %262 : vector<2x32xf32>
    %264 = arith.mulf %259, %263 : vector<2x32xf32>
    %265 = vector.extract_strided_slice %167 {offsets = [10, 0], sizes = [2, 128], strides = [1, 1]} : vector<16x128xf32> to vector<2x128xf32>
    %cst_44 = arith.constant dense<0.000000e+00> : vector<2x128xf32>
    %266 = tpu.matmul %264, %163, %cst_44 {dimension_numbers = #tpu.dot_dimension_numbers<[1], [0], [0], [1], [0, 0, 1, 1], [], []>} : vector<2x32xf32>, vector<32x128xf32>, vector<2x128xf32> -> vector<2x128xf32>
    %267 = arith.addf %265, %266 : vector<2x128xf32>
    %268 = vector.extract_strided_slice %267 {offsets = [0, 0], sizes = [2, 96], strides = [1, 1]} : vector<2x128xf32> to vector<2x96xf32>
    %269 = arith.negf %268 : vector<2x96xf32>
    %270 = math.exp %269 : vector<2x96xf32>
    %cst_45 = arith.constant 1.000000e+00 : f32
    %271 = vector.broadcast %cst_45 : f32 to vector<2x96xf32>
    %272 = arith.addf %271, %270 : vector<2x96xf32>
    %273 = arith.divf %271, %272 : vector<2x96xf32>
    %274 = vector.extract_strided_slice %267 {offsets = [0, 96], sizes = [2, 32], strides = [1, 1]} : vector<2x128xf32> to vector<2x32xf32>
    %275 = math.tanh %274 : vector<2x32xf32>
    %276 = vector.extract_strided_slice %273 {offsets = [0, 0], sizes = [2, 32], strides = [1, 1]} : vector<2x96xf32> to vector<2x32xf32>
    %277 = vector.extract_strided_slice %273 {offsets = [0, 32], sizes = [2, 32], strides = [1, 1]} : vector<2x96xf32> to vector<2x32xf32>
    %278 = vector.extract_strided_slice %273 {offsets = [0, 64], sizes = [2, 32], strides = [1, 1]} : vector<2x96xf32> to vector<2x32xf32>
    %279 = arith.mulf %277, %262 : vector<2x32xf32>
    %280 = arith.mulf %276, %275 : vector<2x32xf32>
    %281 = arith.addf %279, %280 : vector<2x32xf32>
    %282 = math.tanh %281 : vector<2x32xf32>
    %283 = arith.mulf %278, %282 : vector<2x32xf32>
    %284 = vector.extract_strided_slice %167 {offsets = [12, 0], sizes = [2, 128], strides = [1, 1]} : vector<16x128xf32> to vector<2x128xf32>
    %cst_46 = arith.constant dense<0.000000e+00> : vector<2x128xf32>
    %285 = tpu.matmul %283, %163, %cst_46 {dimension_numbers = #tpu.dot_dimension_numbers<[1], [0], [0], [1], [0, 0, 1, 1], [], []>} : vector<2x32xf32>, vector<32x128xf32>, vector<2x128xf32> -> vector<2x128xf32>
    %286 = arith.addf %284, %285 : vector<2x128xf32>
    %287 = vector.extract_strided_slice %286 {offsets = [0, 0], sizes = [2, 96], strides = [1, 1]} : vector<2x128xf32> to vector<2x96xf32>
    %288 = arith.negf %287 : vector<2x96xf32>
    %289 = math.exp %288 : vector<2x96xf32>
    %cst_47 = arith.constant 1.000000e+00 : f32
    %290 = vector.broadcast %cst_47 : f32 to vector<2x96xf32>
    %291 = arith.addf %290, %289 : vector<2x96xf32>
    %292 = arith.divf %290, %291 : vector<2x96xf32>
    %293 = vector.extract_strided_slice %286 {offsets = [0, 96], sizes = [2, 32], strides = [1, 1]} : vector<2x128xf32> to vector<2x32xf32>
    %294 = math.tanh %293 : vector<2x32xf32>
    %295 = vector.extract_strided_slice %292 {offsets = [0, 0], sizes = [2, 32], strides = [1, 1]} : vector<2x96xf32> to vector<2x32xf32>
    %296 = vector.extract_strided_slice %292 {offsets = [0, 32], sizes = [2, 32], strides = [1, 1]} : vector<2x96xf32> to vector<2x32xf32>
    %297 = vector.extract_strided_slice %292 {offsets = [0, 64], sizes = [2, 32], strides = [1, 1]} : vector<2x96xf32> to vector<2x32xf32>
    %298 = arith.mulf %296, %281 : vector<2x32xf32>
    %299 = arith.mulf %295, %294 : vector<2x32xf32>
    %300 = arith.addf %298, %299 : vector<2x32xf32>
    %301 = math.tanh %300 : vector<2x32xf32>
    %302 = arith.mulf %297, %301 : vector<2x32xf32>
    %303 = vector.extract_strided_slice %167 {offsets = [14, 0], sizes = [2, 128], strides = [1, 1]} : vector<16x128xf32> to vector<2x128xf32>
    %cst_48 = arith.constant dense<0.000000e+00> : vector<2x128xf32>
    %304 = tpu.matmul %302, %163, %cst_48 {dimension_numbers = #tpu.dot_dimension_numbers<[1], [0], [0], [1], [0, 0, 1, 1], [], []>} : vector<2x32xf32>, vector<32x128xf32>, vector<2x128xf32> -> vector<2x128xf32>
    %305 = arith.addf %303, %304 : vector<2x128xf32>
    %306 = vector.extract_strided_slice %305 {offsets = [0, 0], sizes = [2, 96], strides = [1, 1]} : vector<2x128xf32> to vector<2x96xf32>
    %307 = arith.negf %306 : vector<2x96xf32>
    %308 = math.exp %307 : vector<2x96xf32>
    %cst_49 = arith.constant 1.000000e+00 : f32
    %309 = vector.broadcast %cst_49 : f32 to vector<2x96xf32>
    %310 = arith.addf %309, %308 : vector<2x96xf32>
    %311 = arith.divf %309, %310 : vector<2x96xf32>
    %312 = vector.extract_strided_slice %305 {offsets = [0, 96], sizes = [2, 32], strides = [1, 1]} : vector<2x128xf32> to vector<2x32xf32>
    %313 = math.tanh %312 : vector<2x32xf32>
    %314 = vector.extract_strided_slice %311 {offsets = [0, 0], sizes = [2, 32], strides = [1, 1]} : vector<2x96xf32> to vector<2x32xf32>
    %315 = vector.extract_strided_slice %311 {offsets = [0, 32], sizes = [2, 32], strides = [1, 1]} : vector<2x96xf32> to vector<2x32xf32>
    %316 = vector.extract_strided_slice %311 {offsets = [0, 64], sizes = [2, 32], strides = [1, 1]} : vector<2x96xf32> to vector<2x32xf32>
    %317 = arith.mulf %315, %300 : vector<2x32xf32>
    %318 = arith.mulf %314, %313 : vector<2x32xf32>
    %319 = arith.addf %317, %318 : vector<2x32xf32>
    %320 = math.tanh %319 : vector<2x32xf32>
    %321 = arith.mulf %316, %320 : vector<2x32xf32>
    %c0_50 = arith.constant 0 : index
    %c0_51 = arith.constant 0 : index
    %322 = vector.load %arg8[%c0_50, %c0_51] : memref<32x3xf32, #tpu.memory_space<vmem>>, vector<32x3xf32>
    %cst_52 = arith.constant dense<0.000000e+00> : vector<2x3xf32>
    %323 = tpu.matmul %321, %322, %cst_52 {dimension_numbers = #tpu.dot_dimension_numbers<[1], [0], [0], [1], [0, 0, 1, 1], [], []>} : vector<2x32xf32>, vector<32x3xf32>, vector<2x3xf32> -> vector<2x3xf32>
    %c0_53 = arith.constant 0 : index
    %c0_54 = arith.constant 0 : index
    %324 = vector.load %arg9[%c0_53, %c0_54] : memref<1x3xf32, #tpu.memory_space<vmem>>, vector<1x3xf32>
    %325 = vector.broadcast %324 : vector<1x3xf32> to vector<2x3xf32>
    %326 = arith.addf %323, %325 : vector<2x3xf32>
    %c0_55 = arith.constant 0 : index
    %c0_56 = arith.constant 0 : index
    %327 = vector.load %arg10[%c0_55, %c0_56] : memref<2x3xf32, #tpu.memory_space<vmem>>, vector<2x3xf32>
    tpu.vector_store %arg10[%c0_55, %c0_56], %326 {strides = array<i32>} : memref<2x3xf32, #tpu.memory_space<vmem>>, vector<2x3xf32>,
    return
  }
  func.func @transform_0(%arg0: i32) -> (i32, i32) {
    %c0_i32 = arith.constant 0 : i32
    %c0_i32_0 = arith.constant 0 : i32
    %c0_i32_1 = arith.constant 0 : i32
    return %c0_i32, %c0_i32_0 : i32, i32
  }
  func.func @transform_1(%arg0: i32) -> (i32, i32) {
    %c0_i32 = arith.constant 0 : i32
    %c0_i32_0 = arith.constant 0 : i32
    %c0_i32_1 = arith.constant 0 : i32
    return %c0_i32, %c0_i32_0 : i32, i32
  }
  func.func @transform_2(%arg0: i32) -> (i32, i32) {
    %c0_i32 = arith.constant 0 : i32
    %c0_i32_0 = arith.constant 0 : i32
    %c0_i32_1 = arith.constant 0 : i32
    return %c0_i32, %c0_i32_0 : i32, i32
  }
  func.func @transform_3(%arg0: i32) -> (i32, i32) {
    %c0_i32 = arith.constant 0 : i32
    %c0_i32_0 = arith.constant 0 : i32
    %c0_i32_1 = arith.constant 0 : i32
    return %c0_i32, %c0_i32_0 : i32, i32
  }
  func.func @transform_4(%arg0: i32) -> (i32, i32) {
    %c0_i32 = arith.constant 0 : i32
    %c0_i32_0 = arith.constant 0 : i32
    %c0_i32_1 = arith.constant 0 : i32
    return %c0_i32, %c0_i32_0 : i32, i32
  }
  func.func @transform_5(%arg0: i32) -> (i32, i32) {
    %c0_i32 = arith.constant 0 : i32
    %c0_i32_0 = arith.constant 0 : i32
    %c0_i32_1 = arith.constant 0 : i32
    return %c0_i32, %c0_i32_0 : i32, i32
  }
  func.func @transform_6(%arg0: i32) -> (i32, i32) {
    %c0_i32 = arith.constant 0 : i32
    %c0_i32_0 = arith.constant 0 : i32
    %c0_i32_1 = arith.constant 0 : i32
    return %c0_i32, %c0_i32_0 : i32, i32
  }
  func.func @transform_7(%arg0: i32) -> (i32, i32) {
    %c0_i32 = arith.constant 0 : i32
    %c0_i32_0 = arith.constant 0 : i32
    %c0_i32_1 = arith.constant 0 : i32
    return %c0_i32, %c0_i32_0 : i32, i32
  }
  func.func @transform_8(%arg0: i32) -> (i32, i32) {
    %c0_i32 = arith.constant 0 : i32
    %c0_i32_0 = arith.constant 0 : i32
    %c0_i32_1 = arith.constant 0 : i32
    return %c0_i32, %c0_i32_0 : i32, i32
  }
  func.func @transform_9(%arg0: i32) -> (i32, i32) {
    %c0_i32 = arith.constant 0 : i32
    %c0_i32_0 = arith.constant 0 : i32
    %c0_i32_1 = arith.constant 0 : i32
    return %c0_i32, %c0_i32_0 : i32, i32
  }
}

</mosaic_0001>

<llo_original>
// kernel: tpu_custom_call.1
$region0: #{tpu_custom_call.1}
  #allocation0 [shape = 'u32[]', space=smem, size = 0x4, offset = 0x4, fixed_abs, tag = 'smem constant byte address 0x4 - core index']
  #allocation1 [shape = 'u32[72,128]{1,0:T(1,128)}', space=vmem, size = 0x9000, scoped, tag = 'internal scratch']
  %s0 = inlined_call_operand.vmem [shape: f32[16,4], index: 0, kind: input, shape index: {}]
  %s1 = inlined_call_operand.vmem [shape: f32[4,128], index: 1, kind: input, shape index: {}]
  %s2 = inlined_call_operand.vmem [shape: f32[32,128], index: 2, kind: input, shape index: {}]
  %s3 = inlined_call_operand.vmem [shape: f32[1,128], index: 3, kind: input, shape index: {}]
  %s4 = inlined_call_operand.hbm [shape: f32[32,128], index: 4, kind: input, shape index: {}]
  %s5 = inlined_call_operand.hbm [shape: f32[32,128], index: 5, kind: input, shape index: {}]
  %s6 = inlined_call_operand.vmem [shape: f32[1,128], index: 6, kind: input, shape index: {}]
  %s7 = inlined_call_operand.vmem [shape: f32[32,3], index: 7, kind: input, shape index: {}]
  %s8 = inlined_call_operand.vmem [shape: f32[1,3], index: 8, kind: input, shape index: {}]
  %s9 = inlined_call_operand.hbm [shape: f32[2,3], index: 9, kind: output, shape index: {}]
  %s10 = sld [smem:[#allocation0]]
  $region54: #{tpu_custom_call.1} parent=0
    _
  %s12 = ssub.s32 1, %s10
  %s13 = scalar_select 0, %s12, %s10
  $region1: #{tpu_custom_call.1} parent=0
    #allocation2 [shape = 'u8[16384]{0}', space=vmem, size = 0x4000, scoped, tag = 'input window, operand 4, single buffered']
    #allocation3 [shape = 's32[1]{0}', space=sflag, size = 0x4, scoped, tag = 'scoped memory for tpu_custom_call.1']
    #allocation4 [shape = 's32[1]{0}', space=sflag, size = 0x4, scoped, tag = 'scoped memory for tpu_custom_call.1']
    #allocation5 [shape = 'u8[16384]{0}', space=vmem, size = 0x4000, scoped, tag = 'input window, operand 5, single buffered']
    #allocation6 [shape = 's32[1]{0}', space=sflag, size = 0x4, scoped, tag = 'scoped memory for tpu_custom_call.1']
    #allocation7 [shape = 'u8[1024]{0}', space=vmem, size = 0x400, scoped, tag = 'output window, operand 0, single buffered']
    %14 = vsyncpa [#allocation3], 0
    %15 = vsyncpa [#allocation6], 0
    %16 = vsyncpa [#allocation4], 0
    // Predicated region
    $region2: #{tpu_custom_call.1} parent=1 // pred_check
      _
    $region3: #{tpu_custom_call.1} parent=1 // pred_check_branch
      %18 = sbr.rel (0) target = $region5
    $region4: #{tpu_custom_call.1} parent=1 // pred_region
      _
    $region5: #{tpu_custom_call.1} parent=1 // pred_fallthru
      _
    // Predicated region
    $region6: #{tpu_custom_call.1} parent=1 // pred_check
      _
    $region7: #{tpu_custom_call.1} parent=1 // pred_check_branch
      %20 = sbr.rel (0) target = $region9
    $region8: #{tpu_custom_call.1} parent=1 // pred_region
      _
    $region9: #{tpu_custom_call.1} parent=1 // pred_fallthru
      _
    // Predicated region
    $region10: #{tpu_custom_call.1} parent=1 // pred_check
      _
    $region11: #{tpu_custom_call.1} parent=1 // pred_check_branch
      %22 = sbr.rel (0) target = $region13
    $region12: #{tpu_custom_call.1} parent=1 // pred_region
      _
    $region13: #{tpu_custom_call.1} parent=1 // pred_fallthru
      _
    // Predicated region
    $region14: #{tpu_custom_call.1} parent=1 // pred_check
      _
    $region15: #{tpu_custom_call.1} parent=1 // pred_check_branch
      %24 = sbr.rel (0) target = $region17
    $region16: #{tpu_custom_call.1} parent=1 // pred_region
      _
    $region17: #{tpu_custom_call.1} parent=1 // pred_fallthru
      _
    // Predicated region
    $region18: #{tpu_custom_call.1} parent=1 // pred_check
      _
    $region19: #{tpu_custom_call.1} parent=1 // pred_check_branch
      %26 = sbr.rel (0) target = $region21
    $region20: #{tpu_custom_call.1} parent=1 // pred_region
      %28 = vsyncadd [#allocation3], 0
      %s29 = sshll.u32 %s4, 4
      %s30 = int_to_ptr.hbm [resolvable:$true] %s29
      %s31 = sshll.u32 [#allocation2], 4
      %s32 = int_to_ptr.vmem [resolvable:$true] %s31
      %37 = dma.hbm_to_vmem [thread:$0]  %s30, 512, %s32, [#allocation3], 128, 128, 8
    $region21: #{tpu_custom_call.1} parent=1 // pred_fallthru
      _
    // Predicated region
    $region22: #{tpu_custom_call.1} parent=1 // pred_check
      _
    $region23: #{tpu_custom_call.1} parent=1 // pred_check_branch
      %39 = sbr.rel (0) target = $region25
    $region24: #{tpu_custom_call.1} parent=1 // pred_region
      %41 = vsyncadd [#allocation6], 0
      %s42 = sshll.u32 %s5, 4
      %s43 = int_to_ptr.hbm [resolvable:$true] %s42
      %s44 = sshll.u32 [#allocation5], 4
      %s45 = int_to_ptr.vmem [resolvable:$true] %s44
      %50 = dma.hbm_to_vmem [thread:$0]  %s43, 512, %s45, [#allocation6], 128, 128, 8
    $region25: #{tpu_custom_call.1} parent=1 // pred_fallthru
      _
    // Predicated region
    $region26: #{tpu_custom_call.1} parent=1 // pred_check
      _
    $region27: #{tpu_custom_call.1} parent=1 // pred_check_branch
      %52 = sbr.rel (0) target = $region29
    $region28: #{tpu_custom_call.1} parent=1 // pred_region
      _
    $region29: #{tpu_custom_call.1} parent=1 // pred_fallthru
      _
    // Predicated region
    $region30: #{tpu_custom_call.1} parent=1 // pred_check
      _
    $region31: #{tpu_custom_call.1} parent=1 // pred_check_branch
      %54 = sbr.rel (0) target = $region33
    $region32: #{tpu_custom_call.1} parent=1 // pred_region
      _
    $region33: #{tpu_custom_call.1} parent=1 // pred_fallthru
      _
    // Predicated region
    $region34: #{tpu_custom_call.1} parent=1 // pred_check
      _
    $region35: #{tpu_custom_call.1} parent=1 // pred_check_branch
      %56 = sbr.rel (0) target = $region37
    $region36: #{tpu_custom_call.1} parent=1 // pred_region
      _
    $region37: #{tpu_custom_call.1} parent=1 // pred_fallthru
      _
    // Predicated region
    $region38: #{tpu_custom_call.1} parent=1 // pred_check
      _
    $region39: #{tpu_custom_call.1} parent=1 // pred_check_branch
      %58 = sbr.rel (0) target = $region41
    $region40: #{tpu_custom_call.1} parent=1 // pred_region
      %60 = dma.done [#allocation3], 512
    $region41: #{tpu_custom_call.1} parent=1 // pred_fallthru
      _
    // Predicated region
    $region42: #{tpu_custom_call.1} parent=1 // pred_check
      _
    $region43: #{tpu_custom_call.1} parent=1 // pred_check_branch
      %62 = sbr.rel (0) target = $region45
    $region44: #{tpu_custom_call.1} parent=1 // pred_region
      %64 = dma.done [#allocation6], 512
    $region45: #{tpu_custom_call.1} parent=1 // pred_fallthru
      _
    %v65 = vld [vmem:[%s0] sm:$0xff]
    %v66 = vld [vmem:[%s0 + $0x8] sm:$0xff]
    %v67 = vld [vmem:[%s1] sm:$0xf]
    %v68 = vld [vmem:[%s2] sm:$0xff]
    %v69 = vld [vmem:[%s2 + $0x8] sm:$0xff]
    %v70 = vld [vmem:[%s2 + $0x10] sm:$0xff]
    %v71 = vld [vmem:[%s2 + $0x18] sm:$0xff]
    %v72 = vld [vmem:[%s3] sm:$0x1]
    %v74 = vperm.slane %v72, 0
    %vm76 = vcmask 31744
    %v78 = vsel %vm76, %v65, 0
    %v81 = vsel %vm76, %v66, 0
    %vm83 = vcmask 1043456
    %v85 = vsel %vm83, %v67, 0
    %87 = vmatpush.msra.mxu0 0.0
    %88 = vmatpush.msra.mxu0 0.0
    %89 = vmatpush.msra.mxu0 0.0
    %90 = vmatpush.msra.mxu0 0.0
    %91 = vmatpush.msra.mxu0 0.0
    %92 = vmatpush.msra.mxu0 0.0
    %93 = vmatpush.msra.mxu0 0.0
    %94 = vmatpush.msra.mxu0 0.0
    %95 = vmatpush.msra.mxu0 0.0
    %96 = vmatpush.msra.mxu0 0.0
    %97 = vmatpush.msra.mxu0 0.0
    %98 = vmatpush.msra.mxu0 0.0
    %99 = vmatpush.msra.mxu0 0.0
    %100 = vmatpush.msra.mxu0 0.0
    %101 = vmatpush.msra.mxu0 0.0
    %102 = vmatpush.msra.mxu0 %v85
    %103 = vmatmul.f32.gmra.mxu0 %v78
    %v104 = vpop.f32.mrf.mxu0
    %v105 = vadd.f32 %v74, %v104
    %106 = vmatmul.f32.gmra.mxu0 %v81
    %v107 = vpop.f32.mrf.mxu0
    %v108 = vadd.f32 %v74, %v107
    %109 = vdwg.mxu0
    %vm110 = vcmask 261120
    %v112 = vsel %vm110, 0.0, 0
    %114 = vmatpush.msra.mxu0 0.0
    %115 = vmatpush.msra.mxu0 0.0
    %116 = vmatpush.msra.mxu0 0.0
    %117 = vmatpush.msra.mxu0 0.0
    %118 = vmatpush.msra.mxu0 0.0
    %119 = vmatpush.msra.mxu0 0.0
    %120 = vmatpush.msra.mxu0 0.0
    %121 = vmatpush.msra.mxu0 0.0
    %122 = vmatpush.msra.mxu0 0.0
    %123 = vmatpush.msra.mxu0 0.0
    %124 = vmatpush.msra.mxu0 0.0
    %125 = vmatpush.msra.mxu0 0.0
    %126 = vmatpush.msra.mxu0 %v71
    %127 = vmatpush.msra.mxu0 %v70
    %128 = vmatpush.msra.mxu0 %v69
    %129 = vmatpush.msra.mxu0 %v68
    %130 = vmatmul.f32.gmra.mxu0 %v112
    %v131 = vpop.f32.mrf.mxu0
    %v132 = vadd.f32 0.0, %v131
    %133 = vdwg.mxu0
    %v134 = vadd.f32 %v105, %v132
    %v135 = vxor.u32 %v134, 2147483648
    %v136 = vmul.f32 %v135, 1.442695
    %v137 = vpow.pop %v136
    %v138 = vadd.f32 %v137, 1.0
    %v139 = vrcp.pop %v138
    %v140 = vmul.f32 %v138, %v139
    %v141 = vsub.f32 1.0, %v140
    %v142 = vmul.f32 %v139, %v141
    %v143 = vadd.f32 %v139, %v142
    %vm144 = vweird.f32 %v138
    %vm145 = vweird.f32 %v139
    %vm146 = vmor %vm144, %vm145
    %v147 = vsel %vm146, %v139, %v143
    %v148 = vand.u32 2147483647, %v138
    %vm149 = vcmp.eq.f32.partialorder %v148, 8.507059e+37
    %v150 = vand.u32 %v138, 2147483648
    %v151 = vor.u32 1.1754944e-38, %v150
    %v152 = vsel %vm149, %v151, %v147
    %v153 = vmul.f32 1.0, %v152
    %v154 = vtanh.pop %v134
    %v155 = vmul.f32 %v153, 0.0
    %157 = vrot.lane.b32.xlu0 %v154, 32
    %v158 = vpop.permute.xlu0 %157
    %v160 = vmul.f32 %v153, %v158
    %162 = vrot.lane.b32.xlu0 %v160, 32
    %v163 = vpop.permute.xlu0 %162
    %v165 = vadd.f32 %v155, %v163
    %v166 = vtanh.pop %v165
    %168 = vrot.lane.b32.xlu0 %v166, 32
    %v169 = vpop.permute.xlu0 %168
    %v171 = vmul.f32 %v153, %v169
    %173 = vrot.lane.b32.xlu0 %v171, 64
    %v174 = vpop.permute.xlu0 %173
    %v175 = vsel %vm110, %v174, 0
    %177 = vmatpush.msra.mxu0 0.0
    %178 = vmatpush.msra.mxu0 0.0
    %179 = vmatpush.msra.mxu0 0.0
    %180 = vmatpush.msra.mxu0 0.0
    %181 = vmatpush.msra.mxu0 0.0
    %182 = vmatpush.msra.mxu0 0.0
    %183 = vmatpush.msra.mxu0 0.0
    %184 = vmatpush.msra.mxu0 0.0
    %185 = vmatpush.msra.mxu0 0.0
    %186 = vmatpush.msra.mxu0 0.0
    %187 = vmatpush.msra.mxu0 0.0
    %188 = vmatpush.msra.mxu0 0.0
    %189 = vmatpush.msra.mxu0 %v71
    %190 = vmatpush.msra.mxu0 %v70
    %191 = vmatpush.msra.mxu0 %v69
    %192 = vmatpush.msra.mxu0 %v68
    %193 = vmatmul.f32.gmra.mxu0 %v175
    %v194 = vpop.f32.mrf.mxu0
    %v195 = vadd.f32 0.0, %v194
    %196 = vdwg.mxu0
    %v198 = vrot.slane %v195, 6
    %v200 = vadd.f32 %v105, %v198
    %v201 = vxor.u32 %v200, 2147483648
    %v202 = vmul.f32 %v201, 1.442695
    %v203 = vpow.pop %v202
    %v204 = vadd.f32 %v203, 1.0
    %v205 = vrcp.pop %v204
    %v206 = vmul.f32 %v204, %v205
    %v207 = vsub.f32 1.0, %v206
    %v208 = vmul.f32 %v205, %v207
    %v209 = vadd.f32 %v205, %v208
    %vm210 = vweird.f32 %v204
    %vm211 = vweird.f32 %v205
    %vm212 = vmor %vm210, %vm211
    %v213 = vsel %vm212, %v205, %v209
    %v214 = vand.u32 2147483647, %v204
    %vm215 = vcmp.eq.f32.partialorder %v214, 8.507059e+37
    %v216 = vand.u32 %v204, 2147483648
    %v217 = vor.u32 1.1754944e-38, %v216
    %v218 = vsel %vm215, %v217, %v213
    %v219 = vmul.f32 1.0, %v218
    %v220 = vtanh.pop %v200
    %v222 = vrot.slane %v165, 6
    %v224 = vmul.f32 %v219, %v222
    %226 = vrot.lane.b32.xlu0 %v220, 32
    %v227 = vpop.permute.xlu0 %226
    %v229 = vmul.f32 %v219, %v227
    %231 = vrot.lane.b32.xlu0 %v229, 32
    %v232 = vpop.permute.xlu0 %231
    %v234 = vadd.f32 %v224, %v232
    %v235 = vtanh.pop %v234
    %237 = vrot.lane.b32.xlu0 %v235, 32
    %v238 = vpop.permute.xlu0 %237
    %v240 = vmul.f32 %v219, %v238
    %v242 = vrot.slane %v240, 2
    %243 = vrot.lane.b32.xlu0 %v242, 64
    %v244 = vpop.permute.xlu0 %243
    %v245 = vsel %vm110, %v244, 0
    %247 = vmatpush.msra.mxu0 0.0
    %248 = vmatpush.msra.mxu0 0.0
    %249 = vmatpush.msra.mxu0 0.0
    %250 = vmatpush.msra.mxu0 0.0
    %251 = vmatpush.msra.mxu0 0.0
    %252 = vmatpush.msra.mxu0 0.0
    %253 = vmatpush.msra.mxu0 0.0
    %254 = vmatpush.msra.mxu0 0.0
    %255 = vmatpush.msra.mxu0 0.0
    %256 = vmatpush.msra.mxu0 0.0
    %257 = vmatpush.msra.mxu0 0.0
    %258 = vmatpush.msra.mxu0 0.0
    %259 = vmatpush.msra.mxu0 %v71
    %260 = vmatpush.msra.mxu0 %v70
    %261 = vmatpush.msra.mxu0 %v69
    %262 = vmatpush.msra.mxu0 %v68
    %263 = vmatmul.f32.gmra.mxu0 %v245
    %v264 = vpop.f32.mrf.mxu0
    %v265 = vadd.f32 0.0, %v264
    %266 = vdwg.mxu0
    %v268 = vrot.slane %v265, 4
    %v270 = vadd.f32 %v105, %v268
    %v271 = vxor.u32 %v270, 2147483648
    %v272 = vmul.f32 %v271, 1.442695
    %v273 = vpow.pop %v272
    %v274 = vadd.f32 %v273, 1.0
    %v275 = vrcp.pop %v274
    %v276 = vmul.f32 %v274, %v275
    %v277 = vsub.f32 1.0, %v276
    %v278 = vmul.f32 %v275, %v277
    %v279 = vadd.f32 %v275, %v278
    %vm280 = vweird.f32 %v274
    %vm281 = vweird.f32 %v275
    %vm282 = vmor %vm280, %vm281
    %v283 = vsel %vm282, %v275, %v279
    %v284 = vand.u32 2147483647, %v274
    %vm285 = vcmp.eq.f32.partialorder %v284, 8.507059e+37
    %v286 = vand.u32 %v274, 2147483648
    %v287 = vor.u32 1.1754944e-38, %v286
    %v288 = vsel %vm285, %v287, %v283
    %v289 = vmul.f32 1.0, %v288
    %v290 = vtanh.pop %v270
    %v292 = vrot.slane %v234, 6
    %v294 = vmul.f32 %v289, %v292
    %296 = vrot.lane.b32.xlu0 %v290, 32
    %v297 = vpop.permute.xlu0 %296
    %v299 = vmul.f32 %v289, %v297
    %301 = vrot.lane.b32.xlu0 %v299, 32
    %v302 = vpop.permute.xlu0 %301
    %v304 = vadd.f32 %v294, %v302
    %v305 = vtanh.pop %v304
    %307 = vrot.lane.b32.xlu0 %v305, 32
    %v308 = vpop.permute.xlu0 %307
    %v310 = vmul.f32 %v289, %v308
    %v312 = vrot.slane %v310, 4
    %313 = vrot.lane.b32.xlu0 %v312, 64
    %v314 = vpop.permute.xlu0 %313
    %v315 = vsel %vm110, %v314, 0
    %317 = vmatpush.msra.mxu0 0.0
    %318 = vmatpush.msra.mxu0 0.0
    %319 = vmatpush.msra.mxu0 0.0
    %320 = vmatpush.msra.mxu0 0.0
    %321 = vmatpush.msra.mxu0 0.0
    %322 = vmatpush.msra.mxu0 0.0
    %323 = vmatpush.msra.mxu0 0.0
    %324 = vmatpush.msra.mxu0 0.0
    %325 = vmatpush.msra.mxu0 0.0
    %326 = vmatpush.msra.mxu0 0.0
    %327 = vmatpush.msra.mxu0 0.0
    %328 = vmatpush.msra.mxu0 0.0
    %329 = vmatpush.msra.mxu0 %v71
    %330 = vmatpush.msra.mxu0 %v70
    %331 = vmatpush.msra.mxu0 %v69
    %332 = vmatpush.msra.mxu0 %v68
    %333 = vmatmul.f32.gmra.mxu0 %v315
    %v334 = vpop.f32.mrf.mxu0
    %v335 = vadd.f32 0.0, %v334
    %336 = vdwg.mxu0
    %v338 = vrot.slane %v335, 2
    %v340 = vadd.f32 %v105, %v338
    %v341 = vxor.u32 %v340, 2147483648
    %v342 = vmul.f32 %v341, 1.442695
    %v343 = vpow.pop %v342
    %v344 = vadd.f32 %v343, 1.0
    %v345 = vrcp.pop %v344
    %v346 = vmul.f32 %v344, %v345
    %v347 = vsub.f32 1.0, %v346
    %v348 = vmul.f32 %v345, %v347
    %v349 = vadd.f32 %v345, %v348
    %vm350 = vweird.f32 %v344
    %vm351 = vweird.f32 %v345
    %vm352 = vmor %vm350, %vm351
    %v353 = vsel %vm352, %v345, %v349
    %v354 = vand.u32 2147483647, %v344
    %vm355 = vcmp.eq.f32.partialorder %v354, 8.507059e+37
    %v356 = vand.u32 %v344, 2147483648
    %v357 = vor.u32 1.1754944e-38, %v356
    %v358 = vsel %vm355, %v357, %v353
    %v359 = vmul.f32 1.0, %v358
    %v360 = vtanh.pop %v340
    %v362 = vrot.slane %v304, 6
    %v364 = vmul.f32 %v359, %v362
    %366 = vrot.lane.b32.xlu0 %v360, 32
    %v367 = vpop.permute.xlu0 %366
    %v369 = vmul.f32 %v359, %v367
    %371 = vrot.lane.b32.xlu0 %v369, 32
    %v372 = vpop.permute.xlu0 %371
    %v374 = vadd.f32 %v364, %v372
    %v375 = vtanh.pop %v374
    %377 = vrot.lane.b32.xlu0 %v375, 32
    %v378 = vpop.permute.xlu0 %377
    %v380 = vmul.f32 %v359, %v378
    %v382 = vrot.slane %v380, 6
    %383 = vrot.lane.b32.xlu0 %v382, 64
    %v384 = vpop.permute.xlu0 %383
    %v385 = vsel %vm110, %v384, 0
    %387 = vmatpush.msra.mxu0 0.0
    %388 = vmatpush.msra.mxu0 0.0
    %389 = vmatpush.msra.mxu0 0.0
    %390 = vmatpush.msra.mxu0 0.0
    %391 = vmatpush.msra.mxu0 0.0
    %392 = vmatpush.msra.mxu0 0.0
    %393 = vmatpush.msra.mxu0 0.0
    %394 = vmatpush.msra.mxu0 0.0
    %395 = vmatpush.msra.mxu0 0.0
    %396 = vmatpush.msra.mxu0 0.0
    %397 = vmatpush.msra.mxu0 0.0
    %398 = vmatpush.msra.mxu0 0.0
    %399 = vmatpush.msra.mxu0 %v71
    %400 = vmatpush.msra.mxu0 %v70
    %401 = vmatpush.msra.mxu0 %v69
    %402 = vmatpush.msra.mxu0 %v68
    %403 = vmatmul.f32.gmra.mxu0 %v385
    %v404 = vpop.f32.mrf.mxu0
    %v405 = vadd.f32 0.0, %v404
    %406 = vdwg.mxu0
    %v407 = vadd.f32 %v108, %v405
    %v408 = vxor.u32 %v407, 2147483648
    %v409 = vmul.f32 %v408, 1.442695
    %v410 = vpow.pop %v409
    %v411 = vadd.f32 %v410, 1.0
    %v412 = vrcp.pop %v411
    %v413 = vmul.f32 %v411, %v412
    %v414 = vsub.f32 1.0, %v413
    %v415 = vmul.f32 %v412, %v414
    %v416 = vadd.f32 %v412, %v415
    %vm417 = vweird.f32 %v411
    %vm418 = vweird.f32 %v412
    %vm419 = vmor %vm417, %vm418
    %v420 = vsel %vm419, %v412, %v416
    %v421 = vand.u32 2147483647, %v411
    %vm422 = vcmp.eq.f32.partialorder %v421, 8.507059e+37
    %v423 = vand.u32 %v411, 2147483648
    %v424 = vor.u32 1.1754944e-38, %v423
    %v425 = vsel %vm422, %v424, %v420
    %v426 = vmul.f32 1.0, %v425
    %v427 = vtanh.pop %v407
    %v429 = vrot.slane %v374, 6
    %v431 = vmul.f32 %v426, %v429
    %433 = vrot.lane.b32.xlu0 %v427, 32
    %v434 = vpop.permute.xlu0 %433
    %v436 = vmul.f32 %v426, %v434
    %438 = vrot.lane.b32.xlu0 %v436, 32
    %v439 = vpop.permute.xlu0 %438
    %v441 = vadd.f32 %v431, %v439
    %v442 = vtanh.pop %v441
    %444 = vrot.lane.b32.xlu0 %v442, 32
    %v445 = vpop.permute.xlu0 %444
    %v447 = vmul.f32 %v426, %v445
    %449 = vrot.lane.b32.xlu0 %v447, 64
    %v450 = vpop.permute.xlu0 %449
    %v451 = vsel %vm110, %v450, 0
    %453 = vmatpush.msra.mxu0 0.0
    %454 = vmatpush.msra.mxu0 0.0
    %455 = vmatpush.msra.mxu0 0.0
    %456 = vmatpush.msra.mxu0 0.0
    %457 = vmatpush.msra.mxu0 0.0
    %458 = vmatpush.msra.mxu0 0.0
    %459 = vmatpush.msra.mxu0 0.0
    %460 = vmatpush.msra.mxu0 0.0
    %461 = vmatpush.msra.mxu0 0.0
    %462 = vmatpush.msra.mxu0 0.0
    %463 = vmatpush.msra.mxu0 0.0
    %464 = vmatpush.msra.mxu0 0.0
    %465 = vmatpush.msra.mxu0 %v71
    %466 = vmatpush.msra.mxu0 %v70
    %467 = vmatpush.msra.mxu0 %v69
    %468 = vmatpush.msra.mxu0 %v68
    %469 = vmatmul.f32.gmra.mxu0 %v451
    %v470 = vpop.f32.mrf.mxu0
    %v471 = vadd.f32 0.0, %v470
    %472 = vdwg.mxu0
    %v474 = vrot.slane %v471, 6
    %v476 = vadd.f32 %v108, %v474
    %v477 = vxor.u32 %v476, 2147483648
    %v478 = vmul.f32 %v477, 1.442695
    %v479 = vpow.pop %v478
    %v480 = vadd.f32 %v479, 1.0
    %v481 = vrcp.pop %v480
    %v482 = vmul.f32 %v480, %v481
    %v483 = vsub.f32 1.0, %v482
    %v484 = vmul.f32 %v481, %v483
    %v485 = vadd.f32 %v481, %v484
    %vm486 = vweird.f32 %v480
    %vm487 = vweird.f32 %v481
    %vm488 = vmor %vm486, %vm487
    %v489 = vsel %vm488, %v481, %v485
    %v490 = vand.u32 2147483647, %v480
    %vm491 = vcmp.eq.f32.partialorder %v490, 8.507059e+37
    %v492 = vand.u32 %v480, 2147483648
    %v493 = vor.u32 1.1754944e-38, %v492
    %v494 = vsel %vm491, %v493, %v489
    %v495 = vmul.f32 1.0, %v494
    %v496 = vtanh.pop %v476
    %v498 = vrot.slane %v441, 6
    %v500 = vmul.f32 %v495, %v498
    %502 = vrot.lane.b32.xlu0 %v496, 32
    %v503 = vpop.permute.xlu0 %502
    %v505 = vmul.f32 %v495, %v503
    %507 = vrot.lane.b32.xlu0 %v505, 32
    %v508 = vpop.permute.xlu0 %507
    %v510 = vadd.f32 %v500, %v508
    %v511 = vtanh.pop %v510
    %513 = vrot.lane.b32.xlu0 %v511, 32
    %v514 = vpop.permute.xlu0 %513
    %v516 = vmul.f32 %v495, %v514
    %v518 = vrot.slane %v516, 2
    %519 = vrot.lane.b32.xlu0 %v518, 64
    %v520 = vpop.permute.xlu0 %519
    %v521 = vsel %vm110, %v520, 0
    %523 = vmatpush.msra.mxu0 0.0
    %524 = vmatpush.msra.mxu0 0.0
    %525 = vmatpush.msra.mxu0 0.0
    %526 = vmatpush.msra.mxu0 0.0
    %527 = vmatpush.msra.mxu0 0.0
    %528 = vmatpush.msra.mxu0 0.0
    %529 = vmatpush.msra.mxu0 0.0
    %530 = vmatpush.msra.mxu0 0.0
    %531 = vmatpush.msra.mxu0 0.0
    %532 = vmatpush.msra.mxu0 0.0
    %533 = vmatpush.msra.mxu0 0.0
    %534 = vmatpush.msra.mxu0 0.0
    %535 = vmatpush.msra.mxu0 %v71
    %536 = vmatpush.msra.mxu0 %v70
    %537 = vmatpush.msra.mxu0 %v69
    %538 = vmatpush.msra.mxu0 %v68
    %539 = vmatmul.f32.gmra.mxu0 %v521
    %v540 = vpop.f32.mrf.mxu0
    %v541 = vadd.f32 0.0, %v540
    %542 = vdwg.mxu0
    %v544 = vrot.slane %v541, 4
    %v546 = vadd.f32 %v108, %v544
    %v547 = vxor.u32 %v546, 2147483648
    %v548 = vmul.f32 %v547, 1.442695
    %v549 = vpow.pop %v548
    %v550 = vadd.f32 %v549, 1.0
    %v551 = vrcp.pop %v550
    %v552 = vmul.f32 %v550, %v551
    %v553 = vsub.f32 1.0, %v552
    %v554 = vmul.f32 %v551, %v553
    %v555 = vadd.f32 %v551, %v554
    %vm556 = vweird.f32 %v550
    %vm557 = vweird.f32 %v551
    %vm558 = vmor %vm556, %vm557
    %v559 = vsel %vm558, %v551, %v555
    %v560 = vand.u32 2147483647, %v550
    %vm561 = vcmp.eq.f32.partialorder %v560, 8.507059e+37
    %v562 = vand.u32 %v550, 2147483648
    %v563 = vor.u32 1.1754944e-38, %v562
    %v564 = vsel %vm561, %v563, %v559
    %v565 = vmul.f32 1.0, %v564
    %v566 = vtanh.pop %v546
    %v568 = vrot.slane %v510, 6
    %v570 = vmul.f32 %v565, %v568
    %572 = vrot.lane.b32.xlu0 %v566, 32
    %v573 = vpop.permute.xlu0 %572
    %v575 = vmul.f32 %v565, %v573
    %577 = vrot.lane.b32.xlu0 %v575, 32
    %v578 = vpop.permute.xlu0 %577
    %v580 = vadd.f32 %v570, %v578
    %v581 = vtanh.pop %v580
    %583 = vrot.lane.b32.xlu0 %v581, 32
    %v584 = vpop.permute.xlu0 %583
    %v586 = vmul.f32 %v565, %v584
    %v588 = vrot.slane %v586, 4
    %589 = vrot.lane.b32.xlu0 %v588, 64
    %v590 = vpop.permute.xlu0 %589
    %v591 = vsel %vm110, %v590, 0
    %593 = vmatpush.msra.mxu0 0.0
    %594 = vmatpush.msra.mxu0 0.0
    %595 = vmatpush.msra.mxu0 0.0
    %596 = vmatpush.msra.mxu0 0.0
    %597 = vmatpush.msra.mxu0 0.0
    %598 = vmatpush.msra.mxu0 0.0
    %599 = vmatpush.msra.mxu0 0.0
    %600 = vmatpush.msra.mxu0 0.0
    %601 = vmatpush.msra.mxu0 0.0
    %602 = vmatpush.msra.mxu0 0.0
    %603 = vmatpush.msra.mxu0 0.0
    %604 = vmatpush.msra.mxu0 0.0
    %605 = vmatpush.msra.mxu0 %v71
    %606 = vmatpush.msra.mxu0 %v70
    %607 = vmatpush.msra.mxu0 %v69
    %608 = vmatpush.msra.mxu0 %v68
    %609 = vmatmul.f32.gmra.mxu0 %v591
    %v610 = vpop.f32.mrf.mxu0
    %v611 = vadd.f32 0.0, %v610
    %612 = vdwg.mxu0
    %v614 = vrot.slane %v611, 2
    %v616 = vadd.f32 %v108, %v614
    %v617 = vxor.u32 %v616, 2147483648
    %v618 = vmul.f32 %v617, 1.442695
    %v619 = vpow.pop %v618
    %v620 = vadd.f32 %v619, 1.0
    %v621 = vrcp.pop %v620
    %v622 = vmul.f32 %v620, %v621
    %v623 = vsub.f32 1.0, %v622
    %v624 = vmul.f32 %v621, %v623
    %v625 = vadd.f32 %v621, %v624
    %vm626 = vweird.f32 %v620
    %vm627 = vweird.f32 %v621
    %vm628 = vmor %vm626, %vm627
    %v629 = vsel %vm628, %v621, %v625
    %v630 = vand.u32 2147483647, %v620
    %vm631 = vcmp.eq.f32.partialorder %v630, 8.507059e+37
    %v632 = vand.u32 %v620, 2147483648
    %v633 = vor.u32 1.1754944e-38, %v632
    %v634 = vsel %vm631, %v633, %v629
    %v635 = vmul.f32 1.0, %v634
    %v636 = vtanh.pop %v616
    %v638 = vrot.slane %v580, 6
    %v640 = vmul.f32 %v635, %v638
    %642 = vrot.lane.b32.xlu0 %v636, 32
    %v643 = vpop.permute.xlu0 %642
    %v645 = vmul.f32 %v635, %v643
    %647 = vrot.lane.b32.xlu0 %v645, 32
    %v648 = vpop.permute.xlu0 %647
    %v650 = vadd.f32 %v640, %v648
    %v651 = vtanh.pop %v650
    %653 = vrot.lane.b32.xlu0 %v651, 32
    %v654 = vpop.permute.xlu0 %653
    %v656 = vmul.f32 %v635, %v654
    %vm657 = vcmask 1041408
    %v658 = vsel %vm657, %v171, %v240
    %v659 = vsel %vm83, %v658, %v310
    %vm660 = vcmask 1045504
    %v661 = vsel %vm660, %v659, %v380
    %v662 = vsel %vm657, %v447, %v516
    %v663 = vsel %vm83, %v662, %v586
    %v664 = vsel %vm660, %v663, %v656
    %v665 = vld [vmem:[#allocation2] sm:$0xff]
    %v666 = vld [vmem:[#allocation2 + $0x8] sm:$0xff]
    %v667 = vld [vmem:[#allocation2 + $0x10] sm:$0xff]
    %v668 = vld [vmem:[#allocation2 + $0x18] sm:$0xff]
    %v669 = vld [vmem:[#allocation5] sm:$0xff]
    %v670 = vld [vmem:[#allocation5 + $0x8] sm:$0xff]
    %v671 = vld [vmem:[#allocation5 + $0x10] sm:$0xff]
    %v672 = vld [vmem:[#allocation5 + $0x18] sm:$0xff]
    %v673 = vld [vmem:[%s6] sm:$0x1]
    %v675 = vperm.slane %v673, 0
    %679 = vrot.lane.b32.xlu0 %v661, 64
    %v680 = vpop.permute.xlu0 %679
    %681 = vrot.lane.b32.xlu0 %v664, 64
    %v682 = vpop.permute.xlu0 %681
    %v683 = vsel %vm110, %v680, 0
    %v685 = vsel %vm110, %v682, 0
    %687 = vmatpush.msra.mxu0 0.0
    %688 = vmatpush.msra.mxu0 0.0
    %689 = vmatpush.msra.mxu0 0.0
    %690 = vmatpush.msra.mxu0 0.0
    %691 = vmatpush.msra.mxu0 0.0
    %692 = vmatpush.msra.mxu0 0.0
    %693 = vmatpush.msra.mxu0 0.0
    %694 = vmatpush.msra.mxu0 0.0
    %695 = vmatpush.msra.mxu0 0.0
    %696 = vmatpush.msra.mxu0 0.0
    %697 = vmatpush.msra.mxu0 0.0
    %698 = vmatpush.msra.mxu0 0.0
    %699 = vmatpush.msra.mxu0 %v668
    %700 = vmatpush.msra.mxu0 %v667
    %701 = vmatpush.msra.mxu0 %v666
    %702 = vmatpush.msra.mxu0 %v665
    %703 = vmatmul.f32.gmra.mxu0 %v683
    %v704 = vpop.f32.mrf.mxu0
    %v705 = vadd.f32 %v675, %v704
    %706 = vmatmul.f32.gmra.mxu0 %v685
    %v707 = vpop.f32.mrf.mxu0
    %v708 = vadd.f32 %v675, %v707
    %709 = vdwg.mxu0
    %710 = vmatpush.msra.mxu0 0.0
    %711 = vmatpush.msra.mxu0 0.0
    %712 = vmatpush.msra.mxu0 0.0
    %713 = vmatpush.msra.mxu0 0.0
    %714 = vmatpush.msra.mxu0 0.0
    %715 = vmatpush.msra.mxu0 0.0
    %716 = vmatpush.msra.mxu0 0.0
    %717 = vmatpush.msra.mxu0 0.0
    %718 = vmatpush.msra.mxu0 0.0
    %719 = vmatpush.msra.mxu0 0.0
    %720 = vmatpush.msra.mxu0 0.0
    %721 = vmatpush.msra.mxu0 0.0
    %722 = vmatpush.msra.mxu0 %v672
    %723 = vmatpush.msra.mxu0 %v671
    %724 = vmatpush.msra.mxu0 %v670
    %725 = vmatpush.msra.mxu0 %v669
    %726 = vmatmul.f32.gmra.mxu0 %v112
    %v727 = vpop.f32.mrf.mxu0
    %v728 = vadd.f32 0.0, %v727
    %729 = vdwg.mxu0
    %v730 = vadd.f32 %v705, %v728
    %v731 = vxor.u32 %v730, 2147483648
    %v732 = vmul.f32 %v731, 1.442695
    %v733 = vpow.pop %v732
    %v734 = vadd.f32 %v733, 1.0
    %v735 = vrcp.pop %v734
    %v736 = vmul.f32 %v734, %v735
    %v737 = vsub.f32 1.0, %v736
    %v738 = vmul.f32 %v735, %v737
    %v739 = vadd.f32 %v735, %v738
    %vm740 = vweird.f32 %v734
    %vm741 = vweird.f32 %v735
    %vm742 = vmor %vm740, %vm741
    %v743 = vsel %vm742, %v735, %v739
    %v744 = vand.u32 2147483647, %v734
    %vm745 = vcmp.eq.f32.partialorder %v744, 8.507059e+37
    %v746 = vand.u32 %v734, 2147483648
    %v747 = vor.u32 1.1754944e-38, %v746
    %v748 = vsel %vm745, %v747, %v743
    %v749 = vmul.f32 1.0, %v748
    %v750 = vtanh.pop %v730
    %v751 = vmul.f32 %v749, 0.0
    %753 = vrot.lane.b32.xlu0 %v750, 32
    %v754 = vpop.permute.xlu0 %753
    %v756 = vmul.f32 %v749, %v754
    %758 = vrot.lane.b32.xlu0 %v756, 32
    %v759 = vpop.permute.xlu0 %758
    %v761 = vadd.f32 %v751, %v759
    %v762 = vtanh.pop %v761
    %764 = vrot.lane.b32.xlu0 %v762, 32
    %v765 = vpop.permute.xlu0 %764
    %v767 = vmul.f32 %v749, %v765
    %769 = vrot.lane.b32.xlu0 %v767, 64
    %v770 = vpop.permute.xlu0 %769
    %v771 = vsel %vm110, %v770, 0
    %773 = vmatpush.msra.mxu0 0.0
    %774 = vmatpush.msra.mxu0 0.0
    %775 = vmatpush.msra.mxu0 0.0
    %776 = vmatpush.msra.mxu0 0.0
    %777 = vmatpush.msra.mxu0 0.0
    %778 = vmatpush.msra.mxu0 0.0
    %779 = vmatpush.msra.mxu0 0.0
    %780 = vmatpush.msra.mxu0 0.0
    %781 = vmatpush.msra.mxu0 0.0
    %782 = vmatpush.msra.mxu0 0.0
    %783 = vmatpush.msra.mxu0 0.0
    %784 = vmatpush.msra.mxu0 0.0
    %785 = vmatpush.msra.mxu0 %v672
    %786 = vmatpush.msra.mxu0 %v671
    %787 = vmatpush.msra.mxu0 %v670
    %788 = vmatpush.msra.mxu0 %v669
    %789 = vmatmul.f32.gmra.mxu0 %v771
    %v790 = vpop.f32.mrf.mxu0
    %v791 = vadd.f32 0.0, %v790
    %792 = vdwg.mxu0
    %v794 = vrot.slane %v791, 6
    %v796 = vadd.f32 %v705, %v794
    %v797 = vxor.u32 %v796, 2147483648
    %v798 = vmul.f32 %v797, 1.442695
    %v799 = vpow.pop %v798
    %v800 = vadd.f32 %v799, 1.0
    %v801 = vrcp.pop %v800
    %v802 = vmul.f32 %v800, %v801
    %v803 = vsub.f32 1.0, %v802
    %v804 = vmul.f32 %v801, %v803
    %v805 = vadd.f32 %v801, %v804
    %vm806 = vweird.f32 %v800
    %vm807 = vweird.f32 %v801
    %vm808 = vmor %vm806, %vm807
    %v809 = vsel %vm808, %v801, %v805
    %v810 = vand.u32 2147483647, %v800
    %vm811 = vcmp.eq.f32.partialorder %v810, 8.507059e+37
    %v812 = vand.u32 %v800, 2147483648
    %v813 = vor.u32 1.1754944e-38, %v812
    %v814 = vsel %vm811, %v813, %v809
    %v815 = vmul.f32 1.0, %v814
    %v816 = vtanh.pop %v796
    %v818 = vrot.slane %v761, 6
    %v820 = vmul.f32 %v815, %v818
    %822 = vrot.lane.b32.xlu0 %v816, 32
    %v823 = vpop.permute.xlu0 %822
    %v825 = vmul.f32 %v815, %v823
    %827 = vrot.lane.b32.xlu0 %v825, 32
    %v828 = vpop.permute.xlu0 %827
    %v830 = vadd.f32 %v820, %v828
    %v831 = vtanh.pop %v830
    %833 = vrot.lane.b32.xlu0 %v831, 32
    %v834 = vpop.permute.xlu0 %833
    %v836 = vmul.f32 %v815, %v834
    %v838 = vrot.slane %v836, 2
    %839 = vrot.lane.b32.xlu0 %v838, 64
    %v840 = vpop.permute.xlu0 %839
    %v841 = vsel %vm110, %v840, 0
    %843 = vmatpush.msra.mxu0 0.0
    %844 = vmatpush.msra.mxu0 0.0
    %845 = vmatpush.msra.mxu0 0.0
    %846 = vmatpush.msra.mxu0 0.0
    %847 = vmatpush.msra.mxu0 0.0
    %848 = vmatpush.msra.mxu0 0.0
    %849 = vmatpush.msra.mxu0 0.0
    %850 = vmatpush.msra.mxu0 0.0
    %851 = vmatpush.msra.mxu0 0.0
    %852 = vmatpush.msra.mxu0 0.0
    %853 = vmatpush.msra.mxu0 0.0
    %854 = vmatpush.msra.mxu0 0.0
    %855 = vmatpush.msra.mxu0 %v672
    %856 = vmatpush.msra.mxu0 %v671
    %857 = vmatpush.msra.mxu0 %v670
    %858 = vmatpush.msra.mxu0 %v669
    %859 = vmatmul.f32.gmra.mxu0 %v841
    %v860 = vpop.f32.mrf.mxu0
    %v861 = vadd.f32 0.0, %v860
    %862 = vdwg.mxu0
    %v864 = vrot.slane %v861, 4
    %v866 = vadd.f32 %v705, %v864
    %v867 = vxor.u32 %v866, 2147483648
    %v868 = vmul.f32 %v867, 1.442695
    %v869 = vpow.pop %v868
    %v870 = vadd.f32 %v869, 1.0
    %v871 = vrcp.pop %v870
    %v872 = vmul.f32 %v870, %v871
    %v873 = vsub.f32 1.0, %v872
    %v874 = vmul.f32 %v871, %v873
    %v875 = vadd.f32 %v871, %v874
    %vm876 = vweird.f32 %v870
    %vm877 = vweird.f32 %v871
    %vm878 = vmor %vm876, %vm877
    %v879 = vsel %vm878, %v871, %v875
    %v880 = vand.u32 2147483647, %v870
    %vm881 = vcmp.eq.f32.partialorder %v880, 8.507059e+37
    %v882 = vand.u32 %v870, 2147483648
    %v883 = vor.u32 1.1754944e-38, %v882
    %v884 = vsel %vm881, %v883, %v879
    %v885 = vmul.f32 1.0, %v884
    %v886 = vtanh.pop %v866
    %v888 = vrot.slane %v830, 6
    %v890 = vmul.f32 %v885, %v888
    %892 = vrot.lane.b32.xlu0 %v886, 32
    %v893 = vpop.permute.xlu0 %892
    %v895 = vmul.f32 %v885, %v893
    %897 = vrot.lane.b32.xlu0 %v895, 32
    %v898 = vpop.permute.xlu0 %897
    %v900 = vadd.f32 %v890, %v898
    %v901 = vtanh.pop %v900
    %903 = vrot.lane.b32.xlu0 %v901, 32
    %v904 = vpop.permute.xlu0 %903
    %v906 = vmul.f32 %v885, %v904
    %v908 = vrot.slane %v906, 4
    %909 = vrot.lane.b32.xlu0 %v908, 64
    %v910 = vpop.permute.xlu0 %909
    %v911 = vsel %vm110, %v910, 0
    %913 = vmatpush.msra.mxu0 0.0
    %914 = vmatpush.msra.mxu0 0.0
    %915 = vmatpush.msra.mxu0 0.0
    %916 = vmatpush.msra.mxu0 0.0
    %917 = vmatpush.msra.mxu0 0.0
    %918 = vmatpush.msra.mxu0 0.0
    %919 = vmatpush.msra.mxu0 0.0
    %920 = vmatpush.msra.mxu0 0.0
    %921 = vmatpush.msra.mxu0 0.0
    %922 = vmatpush.msra.mxu0 0.0
    %923 = vmatpush.msra.mxu0 0.0
    %924 = vmatpush.msra.mxu0 0.0
    %925 = vmatpush.msra.mxu0 %v672
    %926 = vmatpush.msra.mxu0 %v671
    %927 = vmatpush.msra.mxu0 %v670
    %928 = vmatpush.msra.mxu0 %v669
    %929 = vmatmul.f32.gmra.mxu0 %v911
    %v930 = vpop.f32.mrf.mxu0
    %v931 = vadd.f32 0.0, %v930
    %932 = vdwg.mxu0
    %v934 = vrot.slane %v931, 2
    %v936 = vadd.f32 %v705, %v934
    %v937 = vxor.u32 %v936, 2147483648
    %v938 = vmul.f32 %v937, 1.442695
    %v939 = vpow.pop %v938
    %v940 = vadd.f32 %v939, 1.0
    %v941 = vrcp.pop %v940
    %v942 = vmul.f32 %v940, %v941
    %v943 = vsub.f32 1.0, %v942
    %v944 = vmul.f32 %v941, %v943
    %v945 = vadd.f32 %v941, %v944
    %vm946 = vweird.f32 %v940
    %vm947 = vweird.f32 %v941
    %vm948 = vmor %vm946, %vm947
    %v949 = vsel %vm948, %v941, %v945
    %v950 = vand.u32 2147483647, %v940
    %vm951 = vcmp.eq.f32.partialorder %v950, 8.507059e+37
    %v952 = vand.u32 %v940, 2147483648
    %v953 = vor.u32 1.1754944e-38, %v952
    %v954 = vsel %vm951, %v953, %v949
    %v955 = vmul.f32 1.0, %v954
    %v956 = vtanh.pop %v936
    %v958 = vrot.slane %v900, 6
    %v960 = vmul.f32 %v955, %v958
    %962 = vrot.lane.b32.xlu0 %v956, 32
    %v963 = vpop.permute.xlu0 %962
    %v965 = vmul.f32 %v955, %v963
    %967 = vrot.lane.b32.xlu0 %v965, 32
    %v968 = vpop.permute.xlu0 %967
    %v970 = vadd.f32 %v960, %v968
    %v971 = vtanh.pop %v970
    %973 = vrot.lane.b32.xlu0 %v971, 32
    %v974 = vpop.permute.xlu0 %973
    %v976 = vmul.f32 %v955, %v974
    %v978 = vrot.slane %v976, 6
    %979 = vrot.lane.b32.xlu0 %v978, 64
    %v980 = vpop.permute.xlu0 %979
    %v981 = vsel %vm110, %v980, 0
    %983 = vmatpush.msra.mxu0 0.0
    %984 = vmatpush.msra.mxu0 0.0
    %985 = vmatpush.msra.mxu0 0.0
    %986 = vmatpush.msra.mxu0 0.0
    %987 = vmatpush.msra.mxu0 0.0
    %988 = vmatpush.msra.mxu0 0.0
    %989 = vmatpush.msra.mxu0 0.0
    %990 = vmatpush.msra.mxu0 0.0
    %991 = vmatpush.msra.mxu0 0.0
    %992 = vmatpush.msra.mxu0 0.0
    %993 = vmatpush.msra.mxu0 0.0
    %994 = vmatpush.msra.mxu0 0.0
    %995 = vmatpush.msra.mxu0 %v672
    %996 = vmatpush.msra.mxu0 %v671
    %997 = vmatpush.msra.mxu0 %v670
    %998 = vmatpush.msra.mxu0 %v669
    %999 = vmatmul.f32.gmra.mxu0 %v981
    %v1000 = vpop.f32.mrf.mxu0
    %v1001 = vadd.f32 0.0, %v1000
    %1002 = vdwg.mxu0
    %v1003 = vadd.f32 %v708, %v1001
    %v1004 = vxor.u32 %v1003, 2147483648
    %v1005 = vmul.f32 %v1004, 1.442695
    %v1006 = vpow.pop %v1005
    %v1007 = vadd.f32 %v1006, 1.0
    %v1008 = vrcp.pop %v1007
    %v1009 = vmul.f32 %v1007, %v1008
    %v1010 = vsub.f32 1.0, %v1009
    %v1011 = vmul.f32 %v1008, %v1010
    %v1012 = vadd.f32 %v1008, %v1011
    %vm1013 = vweird.f32 %v1007
    %vm1014 = vweird.f32 %v1008
    %vm1015 = vmor %vm1013, %vm1014
    %v1016 = vsel %vm1015, %v1008, %v1012
    %v1017 = vand.u32 2147483647, %v1007
    %vm1018 = vcmp.eq.f32.partialorder %v1017, 8.507059e+37
    %v1019 = vand.u32 %v1007, 2147483648
    %v1020 = vor.u32 1.1754944e-38, %v1019
    %v1021 = vsel %vm1018, %v1020, %v1016
    %v1022 = vmul.f32 1.0, %v1021
    %v1023 = vtanh.pop %v1003
    %v1025 = vrot.slane %v970, 6
    %v1027 = vmul.f32 %v1022, %v1025
    %1029 = vrot.lane.b32.xlu0 %v1023, 32
    %v1030 = vpop.permute.xlu0 %1029
    %v1032 = vmul.f32 %v1022, %v1030
    %1034 = vrot.lane.b32.xlu0 %v1032, 32
    %v1035 = vpop.permute.xlu0 %1034
    %v1037 = vadd.f32 %v1027, %v1035
    %v1038 = vtanh.pop %v1037
    %1040 = vrot.lane.b32.xlu0 %v1038, 32
    %v1041 = vpop.permute.xlu0 %1040
    %v1043 = vmul.f32 %v1022, %v1041
    %1045 = vrot.lane.b32.xlu0 %v1043, 64
    %v1046 = vpop.permute.xlu0 %1045
    %v1047 = vsel %vm110, %v1046, 0
    %1049 = vmatpush.msra.mxu0 0.0
    %1050 = vmatpush.msra.mxu0 0.0
    %1051 = vmatpush.msra.mxu0 0.0
    %1052 = vmatpush.msra.mxu0 0.0
    %1053 = vmatpush.msra.mxu0 0.0
    %1054 = vmatpush.msra.mxu0 0.0
    %1055 = vmatpush.msra.mxu0 0.0
    %1056 = vmatpush.msra.mxu0 0.0
    %1057 = vmatpush.msra.mxu0 0.0
    %1058 = vmatpush.msra.mxu0 0.0
    %1059 = vmatpush.msra.mxu0 0.0
    %1060 = vmatpush.msra.mxu0 0.0
    %1061 = vmatpush.msra.mxu0 %v672
    %1062 = vmatpush.msra.mxu0 %v671
    %1063 = vmatpush.msra.mxu0 %v670
    %1064 = vmatpush.msra.mxu0 %v669
    %1065 = vmatmul.f32.gmra.mxu0 %v1047
    %v1066 = vpop.f32.mrf.mxu0
    %v1067 = vadd.f32 0.0, %v1066
    %1068 = vdwg.mxu0
    %v1070 = vrot.slane %v1067, 6
    %v1072 = vadd.f32 %v708, %v1070
    %v1073 = vxor.u32 %v1072, 2147483648
    %v1074 = vmul.f32 %v1073, 1.442695
    %v1075 = vpow.pop %v1074
    %v1076 = vadd.f32 %v1075, 1.0
    %v1077 = vrcp.pop %v1076
    %v1078 = vmul.f32 %v1076, %v1077
    %v1079 = vsub.f32 1.0, %v1078
    %v1080 = vmul.f32 %v1077, %v1079
    %v1081 = vadd.f32 %v1077, %v1080
    %vm1082 = vweird.f32 %v1076
    %vm1083 = vweird.f32 %v1077
    %vm1084 = vmor %vm1082, %vm1083
    %v1085 = vsel %vm1084, %v1077, %v1081
    %v1086 = vand.u32 2147483647, %v1076
    %vm1087 = vcmp.eq.f32.partialorder %v1086, 8.507059e+37
    %v1088 = vand.u32 %v1076, 2147483648
    %v1089 = vor.u32 1.1754944e-38, %v1088
    %v1090 = vsel %vm1087, %v1089, %v1085
    %v1091 = vmul.f32 1.0, %v1090
    %v1092 = vtanh.pop %v1072
    %v1094 = vrot.slane %v1037, 6
    %v1096 = vmul.f32 %v1091, %v1094
    %1098 = vrot.lane.b32.xlu0 %v1092, 32
    %v1099 = vpop.permute.xlu0 %1098
    %v1101 = vmul.f32 %v1091, %v1099
    %1103 = vrot.lane.b32.xlu0 %v1101, 32
    %v1104 = vpop.permute.xlu0 %1103
    %v1106 = vadd.f32 %v1096, %v1104
    %v1107 = vtanh.pop %v1106
    %1109 = vrot.lane.b32.xlu0 %v1107, 32
    %v1110 = vpop.permute.xlu0 %1109
    %v1112 = vmul.f32 %v1091, %v1110
    %v1114 = vrot.slane %v1112, 2
    %1115 = vrot.lane.b32.xlu0 %v1114, 64
    %v1116 = vpop.permute.xlu0 %1115
    %v1117 = vsel %vm110, %v1116, 0
    %1119 = vmatpush.msra.mxu0 0.0
    %1120 = vmatpush.msra.mxu0 0.0
    %1121 = vmatpush.msra.mxu0 0.0
    %1122 = vmatpush.msra.mxu0 0.0
    %1123 = vmatpush.msra.mxu0 0.0
    %1124 = vmatpush.msra.mxu0 0.0
    %1125 = vmatpush.msra.mxu0 0.0
    %1126 = vmatpush.msra.mxu0 0.0
    %1127 = vmatpush.msra.mxu0 0.0
    %1128 = vmatpush.msra.mxu0 0.0
    %1129 = vmatpush.msra.mxu0 0.0
    %1130 = vmatpush.msra.mxu0 0.0
    %1131 = vmatpush.msra.mxu0 %v672
    %1132 = vmatpush.msra.mxu0 %v671
    %1133 = vmatpush.msra.mxu0 %v670
    %1134 = vmatpush.msra.mxu0 %v669
    %1135 = vmatmul.f32.gmra.mxu0 %v1117
    %v1136 = vpop.f32.mrf.mxu0
    %v1137 = vadd.f32 0.0, %v1136
    %1138 = vdwg.mxu0
    %v1140 = vrot.slane %v1137, 4
    %v1142 = vadd.f32 %v708, %v1140
    %v1143 = vxor.u32 %v1142, 2147483648
    %v1144 = vmul.f32 %v1143, 1.442695
    %v1145 = vpow.pop %v1144
    %v1146 = vadd.f32 %v1145, 1.0
    %v1147 = vrcp.pop %v1146
    %v1148 = vmul.f32 %v1146, %v1147
    %v1149 = vsub.f32 1.0, %v1148
    %v1150 = vmul.f32 %v1147, %v1149
    %v1151 = vadd.f32 %v1147, %v1150
    %vm1152 = vweird.f32 %v1146
    %vm1153 = vweird.f32 %v1147
    %vm1154 = vmor %vm1152, %vm1153
    %v1155 = vsel %vm1154, %v1147, %v1151
    %v1156 = vand.u32 2147483647, %v1146
    %vm1157 = vcmp.eq.f32.partialorder %v1156, 8.507059e+37
    %v1158 = vand.u32 %v1146, 2147483648
    %v1159 = vor.u32 1.1754944e-38, %v1158
    %v1160 = vsel %vm1157, %v1159, %v1155
    %v1161 = vmul.f32 1.0, %v1160
    %v1162 = vtanh.pop %v1142
    %v1164 = vrot.slane %v1106, 6
    %v1166 = vmul.f32 %v1161, %v1164
    %1168 = vrot.lane.b32.xlu0 %v1162, 32
    %v1169 = vpop.permute.xlu0 %1168
    %v1171 = vmul.f32 %v1161, %v1169
    %1173 = vrot.lane.b32.xlu0 %v1171, 32
    %v1174 = vpop.permute.xlu0 %1173
    %v1176 = vadd.f32 %v1166, %v1174
    %v1177 = vtanh.pop %v1176
    %1179 = vrot.lane.b32.xlu0 %v1177, 32
    %v1180 = vpop.permute.xlu0 %1179
    %v1182 = vmul.f32 %v1161, %v1180
    %v1184 = vrot.slane %v1182, 4
    %1185 = vrot.lane.b32.xlu0 %v1184, 64
    %v1186 = vpop.permute.xlu0 %1185
    %v1187 = vsel %vm110, %v1186, 0
    %1189 = vmatpush.msra.mxu0 0.0
    %1190 = vmatpush.msra.mxu0 0.0
    %1191 = vmatpush.msra.mxu0 0.0
    %1192 = vmatpush.msra.mxu0 0.0
    %1193 = vmatpush.msra.mxu0 0.0
    %1194 = vmatpush.msra.mxu0 0.0
    %1195 = vmatpush.msra.mxu0 0.0
    %1196 = vmatpush.msra.mxu0 0.0
    %1197 = vmatpush.msra.mxu0 0.0
    %1198 = vmatpush.msra.mxu0 0.0
    %1199 = vmatpush.msra.mxu0 0.0
    %1200 = vmatpush.msra.mxu0 0.0
    %1201 = vmatpush.msra.mxu0 %v672
    %1202 = vmatpush.msra.mxu0 %v671
    %1203 = vmatpush.msra.mxu0 %v670
    %1204 = vmatpush.msra.mxu0 %v669
    %1205 = vmatmul.f32.gmra.mxu0 %v1187
    %v1206 = vpop.f32.mrf.mxu0
    %v1207 = vadd.f32 0.0, %v1206
    %1208 = vdwg.mxu0
    %v1210 = vrot.slane %v1207, 2
    %v1212 = vadd.f32 %v708, %v1210
    %v1213 = vxor.u32 %v1212, 2147483648
    %v1214 = vmul.f32 %v1213, 1.442695
    %v1215 = vpow.pop %v1214
    %v1216 = vadd.f32 %v1215, 1.0
    %v1217 = vrcp.pop %v1216
    %v1218 = vmul.f32 %v1216, %v1217
    %v1219 = vsub.f32 1.0, %v1218
    %v1220 = vmul.f32 %v1217, %v1219
    %v1221 = vadd.f32 %v1217, %v1220
    %vm1222 = vweird.f32 %v1216
    %vm1223 = vweird.f32 %v1217
    %vm1224 = vmor %vm1222, %vm1223
    %v1225 = vsel %vm1224, %v1217, %v1221
    %v1226 = vand.u32 2147483647, %v1216
    %vm1227 = vcmp.eq.f32.partialorder %v1226, 8.507059e+37
    %v1228 = vand.u32 %v1216, 2147483648
    %v1229 = vor.u32 1.1754944e-38, %v1228
    %v1230 = vsel %vm1227, %v1229, %v1225
    %v1231 = vmul.f32 1.0, %v1230
    %v1232 = vtanh.pop %v1212
    %v1234 = vrot.slane %v1176, 6
    %v1236 = vmul.f32 %v1231, %v1234
    %1238 = vrot.lane.b32.xlu0 %v1232, 32
    %v1239 = vpop.permute.xlu0 %1238
    %v1241 = vmul.f32 %v1231, %v1239
    %1243 = vrot.lane.b32.xlu0 %v1241, 32
    %v1244 = vpop.permute.xlu0 %1243
    %v1246 = vadd.f32 %v1236, %v1244
    %v1247 = vtanh.pop %v1246
    %1249 = vrot.lane.b32.xlu0 %v1247, 32
    %v1250 = vpop.permute.xlu0 %1249
    %v1252 = vmul.f32 %v1231, %v1250
    %v1253 = vld [vmem:[%s7] sm:$0xff]
    %v1254 = vld [vmem:[%s7 + $0x8] sm:$0xff]
    %v1255 = vld [vmem:[%s7 + $0x10] sm:$0xff]
    %v1256 = vld [vmem:[%s7 + $0x18] sm:$0xff]
    %v1257 = vld [vmem:[%s8] sm:$0x1]
    %v1259 = vperm.slane %v1257, 0
    %v1262 = vrot.slane %v1252, 6
    %1263 = vrot.lane.b32.xlu0 %v1262, 64
    %v1264 = vpop.permute.xlu0 %1263
    %v1265 = vsel %vm110, %v1264, 0
    %1267 = vmatpush.msra.mxu0 0.0
    %1268 = vmatpush.msra.mxu0 0.0
    %1269 = vmatpush.msra.mxu0 0.0
    %1270 = vmatpush.msra.mxu0 0.0
    %1271 = vmatpush.msra.mxu0 0.0
    %1272 = vmatpush.msra.mxu0 0.0
    %1273 = vmatpush.msra.mxu0 0.0
    %1274 = vmatpush.msra.mxu0 0.0
    %1275 = vmatpush.msra.mxu0 0.0
    %1276 = vmatpush.msra.mxu0 0.0
    %1277 = vmatpush.msra.mxu0 0.0
    %1278 = vmatpush.msra.mxu0 0.0
    %1279 = vmatpush.msra.mxu0 %v1256
    %1280 = vmatpush.msra.mxu0 %v1255
    %1281 = vmatpush.msra.mxu0 %v1254
    %1282 = vmatpush.msra.mxu0 %v1253
    %1283 = vmatmul.f32.gmra.mxu0 %v1265
    %v1284 = vpop.f32.mrf.mxu0
    %v1285 = vadd.f32 %v1259, %v1284
    %1286 = vdwg.mxu0
    %vm1287 = vcmask 17408
    %1288 = vst.msk [vmem:[#allocation7] sm:$0x3] %vm1287, %v1285
    // Predicated region
    $region46: #{tpu_custom_call.1} parent=1 // pred_check
      _
    $region47: #{tpu_custom_call.1} parent=1 // pred_check_branch
      %1290 = sbr.rel (0) target = $region49
    $region48: #{tpu_custom_call.1} parent=1 // pred_region
      %1292 = vsyncadd [#allocation4], 0
      %s1294 = sshll.u32 [#allocation7], 4
      %s1295 = int_to_ptr.vmem [resolvable:$true] %s1294
      %s1296 = sshll.u32 %s9, 4
      %s1297 = int_to_ptr.hbm [resolvable:$true] %s1296
      %1299 = dma.vmem_to_hbm [thread:$0]  %s1295, 32, %s1297, [#allocation4]
    $region49: #{tpu_custom_call.1} parent=1 // pred_fallthru
      _
    // Predicated region
    $region50: #{tpu_custom_call.1} parent=1 // pred_check
      _
    $region51: #{tpu_custom_call.1} parent=1 // pred_check_branch
      %1301 = sbr.rel (0) target = $region53
    $region52: #{tpu_custom_call.1} parent=1 // pred_region
      %1303 = dma.done [#allocation4], 32
    $region53: #{tpu_custom_call.1} parent=1 // pred_fallthru
      _
    %1304 = vsyncpa [#allocation3], 1
    %1305 = vsyncpa [#allocation6], 1
    %1306 = vsyncpa [#allocation4], 1

</llo_original>
